<compile_context>
chip_gen: v7x
topology: tpu7x:2x2x1
jax: 0.10.0
libtpu: 0.0.40
codegen_flags: <defaults>
</compile_context>

<pallas_src>
import functools
import math

import jax
import jax.numpy as jnp
from jax import lax
from jax.experimental import pallas as pl
from jax.experimental.pallas import tpu as pltpu

HIDDEN_SIZE = 32      # "hidden_size" of TransitionModel (state encoding dim)
ACTION_SIZE = 8
LSTM_H = 128          # LSTM / MLP width (fixed to 128 in the module)
G4 = 4 * LSTM_H       # concatenated gate width


# ----------------------------------------------------------------------------
# Pallas kernel: one grid step == one chunk of the time axis.
# ----------------------------------------------------------------------------
def _transition_kernel(x_ref, h0_ref, c0_ref,
                       wih_ref, whh_ref,
                       w2_ref, b2_ref, w3_ref, b3_ref, w4_ref, b4_ref,
                       out_ref, hn_ref, cn_ref,
                       hs_sc, h_sc, c_sc,
                       *, t_total, t_chunk, b_pad, unroll):
    ci = pl.program_id(0)

    @pl.when(ci == 0)
    def _init():
        h_sc[...] = h0_ref[...]
        c_sc[...] = c0_ref[...]

    need_mask = (t_total % t_chunk) != 0          # static python bool
    chunk_base = ci * t_chunk

    # ---- serial LSTM recurrence (static trip count, unrolled) ---------------
    def step(t, carry):
        h, c = carry
        row = pl.multiple_of(t * b_pad, 8)
        # Per-step input projection (bias folded into the 1.0 column of x).
        # Independent of h -> under unrolling it overlaps the serial h-chain.
        gx = jnp.dot(x_ref[pl.ds(row, b_pad), :], wih_ref[...],
                     preferred_element_type=jnp.float32)
        gh = jnp.dot(h, whh_ref[...], preferred_element_type=jnp.float32)
        gates = gx + gh
        # gate layout [i | f | o | g]: one 384-lane sigmoid + one 128-lane tanh
        ifo = jax.nn.sigmoid(gates[:, :3 * LSTM_H])
        g_g = jnp.tanh(gates[:, 3 * LSTM_H:])
        i_g = ifo[:, :LSTM_H]
        f_g = ifo[:, LSTM_H:2 * LSTM_H]
        o_g = ifo[:, 2 * LSTM_H:]
        c_new = f_g * c + i_g * g_g
        h_new = o_g * jnp.tanh(c_new)
        if need_mask:
            # Padded time steps must not advance the carry (keeps h_n/c_n exact).
            valid = (chunk_base + t) < t_total
            h_new = jnp.where(valid, h_new, h)
            c_new = jnp.where(valid, c_new, c)
        # Fused head ReLU: the slab already holds relu(h); carry stays raw.
        hs_sc[pl.ds(row, b_pad), :] = jnp.maximum(h_new, 0.0)
        return h_new, c_new

    carry0 = (h_sc[...], c_sc[...])
    h_fin, c_fin = lax.fori_loop(0, t_chunk, step, carry0, unroll=unroll)

    h_sc[...] = h_fin
    c_sc[...] = c_fin
    hn_ref[...] = h_fin
    cn_ref[...] = c_fin

    # ---- batched fused relu-MLP head on the whole chunk's h slab ------------
    y = hs_sc[...]                                   # already relu'd
    y = jnp.maximum(jnp.dot(y, w2_ref[...], preferred_element_type=jnp.float32)
                    + b2_ref[...], 0.0)
    y = jnp.maximum(jnp.dot(y, w3_ref[...], preferred_element_type=jnp.float32)
                    + b3_ref[...], 0.0)
    y = jnp.dot(y, w4_ref[...], preferred_element_type=jnp.float32) + b4_ref[...]
    out_ref[...] = y.astype(out_ref.dtype)           # lane-dense (128-wide) store


def _reorder_gates(w, axis=0):
    """PyTorch LSTM gate order [i, f, g, o] -> kernel order [i, f, o, g]."""
    i, f, g, o = jnp.split(w, 4, axis=axis)
    return jnp.concatenate([i, f, o, g], axis=axis)


def _pick_chunk_and_vmem(T, Bp, Dp, Hp):
    """Derive t_chunk from device VMEM and pick an explicit vmem limit."""
    try:
        cap = int(pltpu.get_tpu_info().vmem_capacity_bytes)
    except Exception:
        cap = 64 * 1024 * 1024          # conservative (v7x per-TC physical)
    # Resident f32 bytes per (time*batch) row: x (double-buffered) + hs slab
    # + out (double-buffered).  No gx slab anymore.
    bytes_per_row = 4 * (2 * Dp + LSTM_H + 2 * Hp)
    budget = cap // 2                   # leave headroom for weights & temporaries
    t_chunk = budget // (Bp * bytes_per_row)
    t_chunk = max(1, min(t_chunk, 256, T))
    weights = 2 * 4 * (Dp * G4 + LSTM_H * G4 + 3 * LSTM_H * LSTM_H + 8 * LSTM_H)
    need = Bp * t_chunk * bytes_per_row + weights + 8 * Bp * LSTM_H * 4
    vmem_limit = min(int(cap * 0.9), max(need + (8 << 20), 24 << 20))
    return t_chunk, vmem_limit


def _pick_unroll(Bp, t_chunk):
    if Bp <= 8:
        u = 8
    elif Bp <= 16:
        u = 4
    elif Bp <= 32:
        u = 2
    else:
        u = 1
    return max(1, min(u, t_chunk))


def transition_forward(ipt, action, params, hidden=None, t_chunk_override=None):
    """Equivalent of TransitionModel.forward(ipt, action, hidden).

    ipt:    (batchsize, trajlen, hidden_size)
    action: (batchsize, trajlen, action_size)
    hidden: None or (h0, c0) each (1, trajlen, 128)
    returns (out, (h_n, c_n)) with out (batchsize, trajlen, hidden_size).
    """
    x = jnp.concatenate([ipt, action], axis=-1).astype(jnp.float32)  # (T, B, Din)
    T, B, Din = x.shape
    H = params["w4"].shape[0]

    Bp = 8 * pl.cdiv(B, 8)                   # sublane-aligned batch
    Dp = 128 * pl.cdiv(Din + 1, 128)         # lane-aligned features (+1 bias col)
    Hp = LSTM_H                              # lane-dense (padded) output width

    t_chunk, vmem_limit = _pick_chunk_and_vmem(T, Bp, Dp, Hp)
    if t_chunk_override is not None:
        t_chunk = max(1, min(int(t_chunk_override), T))
    num_chunks = pl.cdiv(T, t_chunk)
    T_pad = t_chunk * num_chunks
    unroll = _pick_unroll(Bp, t_chunk)

    # x slab with a constant 1.0 column at index Din (folds the LSTM bias).
    x_p = jnp.pad(x, ((0, T_pad - T), (0, Bp - B), (0, Dp - Din)))
    x_p = x_p.at[:, :, Din].set(1.0)
    x2 = x_p.reshape(T_pad * Bp, Dp)         # flattened (time*batch, feature) slab

    # Kernel-friendly parameter layouts (Linear weights transposed to (in, out),
    # gates reordered, zero-padding keeps the math exact).
    w_ih_t = _reorder_gates(params["w_ih"]).T                                # (Din, 512)
    b_l = _reorder_gates(params["b_ih"] + params["b_hh"])                    # (512,)
    w_ih = (jnp.zeros((Dp, G4), jnp.float32)
            .at[:Din, :].set(w_ih_t)
            .at[Din, :].set(b_l))                                            # (Dp, 512)
    w_hh = _reorder_gates(params["w_hh"]).T                                  # (128, 512)
    w2, b2 = params["w2"].T, params["b2"].reshape(1, LSTM_H)
    w3, b3 = params["w3"].T, params["b3"].reshape(1, LSTM_H)
    w4 = jnp.pad(params["w4"].T, ((0, 0), (0, Hp - H)))                      # (128, 128)
    b4 = jnp.pad(params["b4"], (0, Hp - H)).reshape(1, Hp)                   # (1, 128)

    if hidden is None:
        h0 = jnp.zeros((Bp, LSTM_H), jnp.float32)
        c0 = jnp.zeros((Bp, LSTM_H), jnp.float32)
    else:
        h0 = jnp.pad(hidden[0].reshape(B, LSTM_H).astype(jnp.float32),
                     ((0, Bp - B), (0, 0)))
        c0 = jnp.pad(hidden[1].reshape(B, LSTM_H).astype(jnp.float32),
                     ((0, Bp - B), (0, 0)))

    const = lambda shape: pl.BlockSpec(shape, lambda i: tuple(0 for _ in shape))

    kernel = functools.partial(_transition_kernel,
                               t_total=T, t_chunk=t_chunk, b_pad=Bp,
                               unroll=unroll)

    out2, h_n, c_n = pl.pallas_call(
        kernel,
        out_shape=(
            jax.ShapeDtypeStruct((T_pad * Bp, Hp), jnp.float32),
            jax.ShapeDtypeStruct((Bp, LSTM_H), jnp.float32),
            jax.ShapeDtypeStruct((Bp, LSTM_H), jnp.float32),
        ),
        grid_spec=pltpu.PrefetchScalarGridSpec(
            num_scalar_prefetch=0,
            grid=(num_chunks,),
            in_specs=[
                pl.BlockSpec((t_chunk * Bp, Dp), lambda i: (i, 0)),   # x chunk
                const((Bp, LSTM_H)), const((Bp, LSTM_H)),             # h0, c0
                const((Dp, G4)),                                      # W_ih (+bias row)
                const((LSTM_H, G4)),                                  # W_hh
                const((LSTM_H, LSTM_H)), const((1, LSTM_H)),          # fc2
                const((LSTM_H, LSTM_H)), const((1, LSTM_H)),          # fc3
                const((LSTM_H, Hp)), const((1, Hp)),                  # fc4 (padded)
            ],
            out_specs=[
                pl.BlockSpec((t_chunk * Bp, Hp), lambda i: (i, 0)),   # out chunk
                const((Bp, LSTM_H)),                                  # h_n
                const((Bp, LSTM_H)),                                  # c_n
            ],
            scratch_shapes=[
                pltpu.VMEM((t_chunk * Bp, LSTM_H), jnp.float32),  # relu(h) slab
                pltpu.VMEM((Bp, LSTM_H), jnp.float32),            # h carry
                pltpu.VMEM((Bp, LSTM_H), jnp.float32),            # c carry
            ],
        ),
        compiler_params=pltpu.CompilerParams(
            dimension_semantics=("arbitrary",),                   # serial carry
            vmem_limit_bytes=vmem_limit),
    )(x2, h0, c0, w_ih, w_hh, w2, b2, w3, b3, w4, b4)

    out = out2.reshape(T_pad, Bp, Hp)[:T, :B, :H]
    h_n = h_n[:B][None]
    c_n = c_n[:B][None]
    return out, (h_n, c_n)


# ----------------------------------------------------------------------------
# Deterministic parameter init (PyTorch-style uniform(-1/sqrt(fan), 1/sqrt(fan)))
# ----------------------------------------------------------------------------
def init_params(key, hidden_size, action_size):
    din = hidden_size + action_size
    ks = jax.random.split(key, 12)
    u = lambda k, shape, bound: jax.random.uniform(
        k, shape, jnp.float32, -bound, bound)
    kl = 1.0 / math.sqrt(LSTM_H)
    return {
        "w_ih": u(ks[0], (4 * LSTM_H, din), kl),
        "w_hh": u(ks[1], (4 * LSTM_H, LSTM_H), kl),
        "b_ih": u(ks[2], (4 * LSTM_H,), kl),
        "b_hh": u(ks[3], (4 * LSTM_H,), kl),
        "w2": u(ks[4], (LSTM_H, LSTM_H), kl), "b2": u(ks[5], (LSTM_H,), kl),
        "w3": u(ks[6], (LSTM_H, LSTM_H), kl), "b3": u(ks[7], (LSTM_H,), kl),
        "w4": u(ks[8], (hidden_size, LSTM_H), kl), "b4": u(ks[9], (hidden_size,), kl),
    }


# Pure-JAX reference (same semantics, standard [i,f,g,o] gate order).
def reference_forward(ipt, action, p, hidden=None):
    x = jnp.concatenate([ipt, action], axis=-1).astype(jnp.float32)  # (T, B, Din)
    B = x.shape[1]
    if hidden is None:
        h0 = jnp.zeros((B, LSTM_H), jnp.float32)
        c0 = jnp.zeros((B, LSTM_H), jnp.float32)
    else:
        h0 = hidden[0].reshape(B, LSTM_H).astype(jnp.float32)
        c0 = hidden[1].reshape(B, LSTM_H).astype(jnp.float32)

    def step(carry, xt):
        h, c = carry
        gates = xt @ p["w_ih"].T + p["b_ih"] + h @ p["w_hh"].T + p["b_hh"]
        i, f, g, o = jnp.split(gates, 4, axis=-1)
        c_new = jax.nn.sigmoid(f) * c + jax.nn.sigmoid(i) * jnp.tanh(g)
        h_new = jax.nn.sigmoid(o) * jnp.tanh(c_new)
        return (h_new, c_new), h_new

    (hn, cn), hs = lax.scan(step, (h0, c0), x)
    y = jnp.maximum(hs, 0.0)
    y = jnp.maximum(y @ p["w2"].T + p["b2"], 0.0)
    y = jnp.maximum(y @ p["w3"].T + p["b3"], 0.0)
    y = y @ p["w4"].T + p["b4"]
    return y, (hn[None], cn[None])


if __name__ == "__main__":
    key = jax.random.PRNGKey(0)
    kp, ki, ka, ki2, ka2, kh, kc = jax.random.split(key, 7)

    params = init_params(kp, HIDDEN_SIZE, ACTION_SIZE)

    # ---- test 1: shapes matching the module's usual call (hidden=None) ------
    batchsize, trajlen = 2, 8
    ipt = jax.random.normal(ki, (batchsize, trajlen, HIDDEN_SIZE), jnp.float32)
    action = jax.random.normal(ka, (batchsize, trajlen, ACTION_SIZE), jnp.float32)

    out, (h_n, c_n) = transition_forward(ipt, action, params, hidden=None)
    out = jax.block_until_ready(out)
    h_n = jax.block_until_ready(h_n)
    c_n = jax.block_until_ready(c_n)

    ref_out, (ref_h, ref_c) = reference_forward(ipt, action, params)
    assert out.shape == (batchsize, trajlen, HIDDEN_SIZE)
    assert h_n.shape == (1, trajlen, LSTM_H) and c_n.shape == (1, trajlen, LSTM_H)
    assert jnp.allclose(out, ref_out, atol=1e-4, rtol=1e-4)
    assert jnp.allclose(h_n, ref_h, atol=1e-4, rtol=1e-4)
    assert jnp.allclose(c_n, ref_c, atol=1e-4, rtol=1e-4)

    # ---- test 2: ragged time chunking + provided hidden state ----------------
    T2, B2 = 7, 5
    ipt2 = jax.random.normal(ki2, (T2, B2, HIDDEN_SIZE), jnp.float32)
    act2 = jax.random.normal(ka2, (T2, B2, ACTION_SIZE), jnp.float32)
    h0 = 0.1 * jax.random.normal(kh, (1, B2, LSTM_H), jnp.float32)
    c0 = 0.1 * jax.random.normal(kc, (1, B2, LSTM_H), jnp.float32)

    out2, (h2, c2) = transition_forward(ipt2, act2, params, hidden=(h0, c0),
                                        t_chunk_override=3)   # 3 chunks, masked tail
    out2 = jax.block_until_ready(out2)
    ref_out2, (ref_h2, ref_c2) = reference_forward(ipt2, act2, params, hidden=(h0, c0))
    assert jnp.allclose(out2, ref_out2, atol=1e-4, rtol=1e-4)
    assert jnp.allclose(h2, ref_h2, atol=1e-4, rtol=1e-4)
    assert jnp.allclose(c2, ref_c2, atol=1e-4, rtol=1e-4)

    # TODO(synk): predict()/update() (autoregressive rollout + Adam/MSE training
    # step) are host-side control flow around this forward kernel; not lowered.
    print("KERNEL_OK")
</pallas_src>

<mosaic_0001>
module attributes {stable_mosaic.version = 11 : i64} {
  func.func @_transition_kernel(%arg0: i32, %arg1: memref<16x128xf32, #tpu.memory_space<vmem>>, %arg2: memref<8x128xf32, #tpu.memory_space<vmem>>, %arg3: memref<8x128xf32, #tpu.memory_space<vmem>>, %arg4: memref<128x512xf32, #tpu.memory_space<vmem>>, %arg5: memref<128x512xf32, #tpu.memory_space<vmem>>, %arg6: memref<128x128xf32, #tpu.memory_space<vmem>>, %arg7: memref<1x128xf32, #tpu.memory_space<vmem>>, %arg8: memref<128x128xf32, #tpu.memory_space<vmem>>, %arg9: memref<1x128xf32, #tpu.memory_space<vmem>>, %arg10: memref<128x128xf32, #tpu.memory_space<vmem>>, %arg11: memref<1x128xf32, #tpu.memory_space<vmem>>, %arg12: memref<16x128xf32, #tpu.memory_space<vmem>>, %arg13: memref<8x128xf32, #tpu.memory_space<vmem>>, %arg14: memref<8x128xf32, #tpu.memory_space<vmem>>, %arg15: memref<16x128xf32, #tpu.memory_space<vmem>>, %arg16: memref<8x128xf32, #tpu.memory_space<vmem>>, %arg17: memref<8x128xf32, #tpu.memory_space<vmem>>) attributes {dimension_semantics = [#tpu.dimension_semantics<arbitrary>], iteration_bounds = array<i64: 1>, scalar_prefetch = 0 : i64, scratch_operands = 3 : i64, tpu.core_type = #tpu.core_type<tc>, window_params = [{transform_indices = @transform_0, window_bounds = array<i64: 16, 128>}, {pipeline_mode = #tpu.pipeline_mode<synchronous>, transform_indices = @transform_1, window_bounds = array<i64: 8, 128>}, {pipeline_mode = #tpu.pipeline_mode<synchronous>, transform_indices = @transform_2, window_bounds = array<i64: 8, 128>}, {pipeline_mode = #tpu.pipeline_mode<synchronous>, transform_indices = @transform_3, window_bounds = array<i64: 128, 512>}, {pipeline_mode = #tpu.pipeline_mode<synchronous>, transform_indices = @transform_4, window_bounds = array<i64: 128, 512>}, {pipeline_mode = #tpu.pipeline_mode<synchronous>, transform_indices = @transform_5, window_bounds = array<i64: 128, 128>}, {pipeline_mode = #tpu.pipeline_mode<synchronous>, transform_indices = @transform_6, window_bounds = array<i64: 1, 128>}, {pipeline_mode = #tpu.pipeline_mode<synchronous>, transform_indices = @transform_7, window_bounds = array<i64: 128, 128>}, {pipeline_mode = #tpu.pipeline_mode<synchronous>, transform_indices = @transform_8, window_bounds = array<i64: 1, 128>}, {pipeline_mode = #tpu.pipeline_mode<synchronous>, transform_indices = @transform_9, window_bounds = array<i64: 128, 128>}, {pipeline_mode = #tpu.pipeline_mode<synchronous>, transform_indices = @transform_10, window_bounds = array<i64: 1, 128>}, {transform_indices = @transform_11, window_bounds = array<i64: 16, 128>}, {pipeline_mode = #tpu.pipeline_mode<synchronous>, transform_indices = @transform_12, window_bounds = array<i64: 8, 128>}, {pipeline_mode = #tpu.pipeline_mode<synchronous>, transform_indices = @transform_13, window_bounds = array<i64: 8, 128>}]} {
    %c0_i32 = arith.constant 0 : i32
    %0 = arith.cmpi eq, %arg0, %c0_i32 : i32
    %1 = arith.extui %0 : i1 to i32
    %c0_i32_0 = arith.constant 0 : i32
    %2 = arith.cmpi ne, %1, %c0_i32_0 : i32
    scf.if %2 {
      %c0_54 = arith.constant 0 : index
      %c0_55 = arith.constant 0 : index
      %88 = vector.load %arg2[%c0_54, %c0_55] : memref<8x128xf32, #tpu.memory_space<vmem>>, vector<8x128xf32>
      %c0_56 = arith.constant 0 : index
      %c0_57 = arith.constant 0 : index
      %89 = vector.load %arg16[%c0_56, %c0_57] : memref<8x128xf32, #tpu.memory_space<vmem>>, vector<8x128xf32>
      tpu.vector_store %arg16[%c0_56, %c0_57], %88 {strides = array<i32>} : memref<8x128xf32, #tpu.memory_space<vmem>>, vector<8x128xf32>,
      %c0_58 = arith.constant 0 : index
      %c0_59 = arith.constant 0 : index
      %90 = vector.load %arg3[%c0_58, %c0_59] : memref<8x128xf32, #tpu.memory_space<vmem>>, vector<8x128xf32>
      %c0_60 = arith.constant 0 : index
      %c0_61 = arith.constant 0 : index
      %91 = vector.load %arg17[%c0_60, %c0_61] : memref<8x128xf32, #tpu.memory_space<vmem>>, vector<8x128xf32>
      tpu.vector_store %arg17[%c0_60, %c0_61], %90 {strides = array<i32>} : memref<8x128xf32, #tpu.memory_space<vmem>>, vector<8x128xf32>,
    } else {
    }
    %c0 = arith.constant 0 : index
    %c0_1 = arith.constant 0 : index
    %3 = vector.load %arg16[%c0, %c0_1] : memref<8x128xf32, #tpu.memory_space<vmem>>, vector<8x128xf32>
    %c0_2 = arith.constant 0 : index
    %c0_3 = arith.constant 0 : index
    %4 = vector.load %arg17[%c0_2, %c0_3] : memref<8x128xf32, #tpu.memory_space<vmem>>, vector<8x128xf32>
    %c0_i32_4 = arith.constant 0 : i32
    %c8_i32 = arith.constant 8 : i32
    %5 = arith.muli %c0_i32_4, %c8_i32 : i32
    %6 = tpu.assume_multiple %5, 8 : i32
    %7 = arith.index_cast %6 : i32 to index
    %c0_5 = arith.constant 0 : index
    %8 = vector.load %arg1[%7, %c0_5] : memref<16x128xf32, #tpu.memory_space<vmem>>, vector<8x128xf32>
    %c0_6 = arith.constant 0 : index
    %c0_7 = arith.constant 0 : index
    %9 = vector.load %arg4[%c0_6, %c0_7] : memref<128x512xf32, #tpu.memory_space<vmem>>, vector<128x512xf32>
    %cst = arith.constant dense<0.000000e+00> : vector<8x512xf32>
    %10 = tpu.matmul %8, %9, %cst {dimension_numbers = #tpu.dot_dimension_numbers<[1], [0], [0], [1], [0, 0, 1, 1], [], []>} : vector<8x128xf32>, vector<128x512xf32>, vector<8x512xf32> -> vector<8x512xf32>
    %c0_8 = arith.constant 0 : index
    %c0_9 = arith.constant 0 : index
    %11 = vector.load %arg5[%c0_8, %c0_9] : memref<128x512xf32, #tpu.memory_space<vmem>>, vector<128x512xf32>
    %cst_10 = arith.constant dense<0.000000e+00> : vector<8x512xf32>
    %12 = tpu.matmul %3, %11, %cst_10 {dimension_numbers = #tpu.dot_dimension_numbers<[1], [0], [0], [1], [0, 0, 1, 1], [], []>} : vector<8x128xf32>, vector<128x512xf32>, vector<8x512xf32> -> vector<8x512xf32>
    %13 = arith.addf %10, %12 : vector<8x512xf32>
    %14 = vector.extract_strided_slice %13 {offsets = [0, 0], sizes = [8, 384], strides = [1, 1]} : vector<8x512xf32> to vector<8x384xf32>
    %15 = arith.negf %14 : vector<8x384xf32>
    %16 = math.exp %15 : vector<8x384xf32>
    %cst_11 = arith.constant 1.000000e+00 : f32
    %17 = vector.broadcast %cst_11 : f32 to vector<8x384xf32>
    %18 = arith.addf %17, %16 : vector<8x384xf32>
    %19 = arith.divf %17, %18 : vector<8x384xf32>
    %20 = vector.extract_strided_slice %13 {offsets = [0, 384], sizes = [8, 128], strides = [1, 1]} : vector<8x512xf32> to vector<8x128xf32>
    %21 = math.tanh %20 : vector<8x128xf32>
    %22 = vector.extract_strided_slice %19 {offsets = [0, 0], sizes = [8, 128], strides = [1, 1]} : vector<8x384xf32> to vector<8x128xf32>
    %23 = vector.extract_strided_slice %19 {offsets = [0, 128], sizes = [8, 128], strides = [1, 1]} : vector<8x384xf32> to vector<8x128xf32>
    %24 = vector.extract_strided_slice %19 {offsets = [0, 256], sizes = [8, 128], strides = [1, 1]} : vector<8x384xf32> to vector<8x128xf32>
    %25 = arith.mulf %23, %4 : vector<8x128xf32>
    %26 = arith.mulf %22, %21 : vector<8x128xf32>
    %27 = arith.addf %25, %26 : vector<8x128xf32>
    %28 = math.tanh %27 : vector<8x128xf32>
    %29 = arith.mulf %24, %28 : vector<8x128xf32>
    %cst_12 = arith.constant 0.000000e+00 : f32
    %30 = vector.broadcast %cst_12 : f32 to vector<8x128xf32>
    %31 = arith.maximumf %29, %30 : vector<8x128xf32>
    %32 = arith.index_cast %6 : i32 to index
    %c0_13 = arith.constant 0 : index
    %33 = vector.load %arg15[%32, %c0_13] : memref<16x128xf32, #tpu.memory_space<vmem>>, vector<8x128xf32>
    tpu.vector_store %arg15[%32, %c0_13], %31 {strides = array<i32>} : memref<16x128xf32, #tpu.memory_space<vmem>>, vector<8x128xf32>,
    %c1_i32 = arith.constant 1 : i32
    %c8_i32_14 = arith.constant 8 : i32
    %34 = arith.muli %c1_i32, %c8_i32_14 : i32
    %35 = tpu.assume_multiple %34, 8 : i32
    %36 = arith.index_cast %35 : i32 to index
    %c0_15 = arith.constant 0 : index
    %37 = vector.load %arg1[%36, %c0_15] : memref<16x128xf32, #tpu.memory_space<vmem>>, vector<8x128xf32>
    %c0_16 = arith.constant 0 : index
    %c0_17 = arith.constant 0 : index
    %38 = vector.load %arg4[%c0_16, %c0_17] : memref<128x512xf32, #tpu.memory_space<vmem>>, vector<128x512xf32>
    %cst_18 = arith.constant dense<0.000000e+00> : vector<8x512xf32>
    %39 = tpu.matmul %37, %38, %cst_18 {dimension_numbers = #tpu.dot_dimension_numbers<[1], [0], [0], [1], [0, 0, 1, 1], [], []>} : vector<8x128xf32>, vector<128x512xf32>, vector<8x512xf32> -> vector<8x512xf32>
    %c0_19 = arith.constant 0 : index
    %c0_20 = arith.constant 0 : index
    %40 = vector.load %arg5[%c0_19, %c0_20] : memref<128x512xf32, #tpu.memory_space<vmem>>, vector<128x512xf32>
    %cst_21 = arith.constant dense<0.000000e+00> : vector<8x512xf32>
    %41 = tpu.matmul %29, %40, %cst_21 {dimension_numbers = #tpu.dot_dimension_numbers<[1], [0], [0], [1], [0, 0, 1, 1], [], []>} : vector<8x128xf32>, vector<128x512xf32>, vector<8x512xf32> -> vector<8x512xf32>
    %42 = arith.addf %39, %41 : vector<8x512xf32>
    %43 = vector.extract_strided_slice %42 {offsets = [0, 0], sizes = [8, 384], strides = [1, 1]} : vector<8x512xf32> to vector<8x384xf32>
    %44 = arith.negf %43 : vector<8x384xf32>
    %45 = math.exp %44 : vector<8x384xf32>
    %cst_22 = arith.constant 1.000000e+00 : f32
    %46 = vector.broadcast %cst_22 : f32 to vector<8x384xf32>
    %47 = arith.addf %46, %45 : vector<8x384xf32>
    %48 = arith.divf %46, %47 : vector<8x384xf32>
    %49 = vector.extract_strided_slice %42 {offsets = [0, 384], sizes = [8, 128], strides = [1, 1]} : vector<8x512xf32> to vector<8x128xf32>
    %50 = math.tanh %49 : vector<8x128xf32>
    %51 = vector.extract_strided_slice %48 {offsets = [0, 0], sizes = [8, 128], strides = [1, 1]} : vector<8x384xf32> to vector<8x128xf32>
    %52 = vector.extract_strided_slice %48 {offsets = [0, 128], sizes = [8, 128], strides = [1, 1]} : vector<8x384xf32> to vector<8x128xf32>
    %53 = vector.extract_strided_slice %48 {offsets = [0, 256], sizes = [8, 128], strides = [1, 1]} : vector<8x384xf32> to vector<8x128xf32>
    %54 = arith.mulf %52, %27 : vector<8x128xf32>
    %55 = arith.mulf %51, %50 : vector<8x128xf32>
    %56 = arith.addf %54, %55 : vector<8x128xf32>
    %57 = math.tanh %56 : vector<8x128xf32>
    %58 = arith.mulf %53, %57 : vector<8x128xf32>
    %cst_23 = arith.constant 0.000000e+00 : f32
    %59 = vector.broadcast %cst_23 : f32 to vector<8x128xf32>
    %60 = arith.maximumf %58, %59 : vector<8x128xf32>
    %61 = arith.index_cast %35 : i32 to index
    %c0_24 = arith.constant 0 : index
    %62 = vector.load %arg15[%61, %c0_24] : memref<16x128xf32, #tpu.memory_space<vmem>>, vector<8x128xf32>
    tpu.vector_store %arg15[%61, %c0_24], %60 {strides = array<i32>} : memref<16x128xf32, #tpu.memory_space<vmem>>, vector<8x128xf32>,
    %c2_i32 = arith.constant 2 : i32
    %c0_25 = arith.constant 0 : index
    %c0_26 = arith.constant 0 : index
    %63 = vector.load %arg16[%c0_25, %c0_26] : memref<8x128xf32, #tpu.memory_space<vmem>>, vector<8x128xf32>
    tpu.vector_store %arg16[%c0_25, %c0_26], %58 {strides = array<i32>} : memref<8x128xf32, #tpu.memory_space<vmem>>, vector<8x128xf32>,
    %c0_27 = arith.constant 0 : index
    %c0_28 = arith.constant 0 : index
    %64 = vector.load %arg17[%c0_27, %c0_28] : memref<8x128xf32, #tpu.memory_space<vmem>>, vector<8x128xf32>
    tpu.vector_store %arg17[%c0_27, %c0_28], %56 {strides = array<i32>} : memref<8x128xf32, #tpu.memory_space<vmem>>, vector<8x128xf32>,
    %c0_29 = arith.constant 0 : index
    %c0_30 = arith.constant 0 : index
    %65 = vector.load %arg13[%c0_29, %c0_30] : memref<8x128xf32, #tpu.memory_space<vmem>>, vector<8x128xf32>
    tpu.vector_store %arg13[%c0_29, %c0_30], %58 {strides = array<i32>} : memref<8x128xf32, #tpu.memory_space<vmem>>, vector<8x128xf32>,
    %c0_31 = arith.constant 0 : index
    %c0_32 = arith.constant 0 : index
    %66 = vector.load %arg14[%c0_31, %c0_32] : memref<8x128xf32, #tpu.memory_space<vmem>>, vector<8x128xf32>
    tpu.vector_store %arg14[%c0_31, %c0_32], %56 {strides = array<i32>} : memref<8x128xf32, #tpu.memory_space<vmem>>, vector<8x128xf32>,
    %c0_33 = arith.constant 0 : index
    %c0_34 = arith.constant 0 : index
    %67 = vector.load %arg15[%c0_33, %c0_34] : memref<16x128xf32, #tpu.memory_space<vmem>>, vector<16x128xf32>
    %c0_35 = arith.constant 0 : index
    %c0_36 = arith.constant 0 : index
    %68 = vector.load %arg6[%c0_35, %c0_36] : memref<128x128xf32, #tpu.memory_space<vmem>>, vector<128x128xf32>
    %cst_37 = arith.constant dense<0.000000e+00> : vector<16x128xf32>
    %69 = tpu.matmul %67, %68, %cst_37 {dimension_numbers = #tpu.dot_dimension_numbers<[1], [0], [0], [1], [0, 0, 1, 1], [], []>} : vector<16x128xf32>, vector<128x128xf32>, vector<16x128xf32> -> vector<16x128xf32>
    %c0_38 = arith.constant 0 : index
    %c0_39 = arith.constant 0 : index
    %70 = vector.load %arg7[%c0_38, %c0_39] : memref<1x128xf32, #tpu.memory_space<vmem>>, vector<1x128xf32>
    %71 = vector.broadcast %70 : vector<1x128xf32> to vector<16x128xf32>
    %72 = arith.addf %69, %71 : vector<16x128xf32>
    %cst_40 = arith.constant 0.000000e+00 : f32
    %73 = vector.broadcast %cst_40 : f32 to vector<16x128xf32>
    %74 = arith.maximumf %72, %73 : vector<16x128xf32>
    %c0_41 = arith.constant 0 : index
    %c0_42 = arith.constant 0 : index
    %75 = vector.load %arg8[%c0_41, %c0_42] : memref<128x128xf32, #tpu.memory_space<vmem>>, vector<128x128xf32>
    %cst_43 = arith.constant dense<0.000000e+00> : vector<16x128xf32>
    %76 = tpu.matmul %74, %75, %cst_43 {dimension_numbers = #tpu.dot_dimension_numbers<[1], [0], [0], [1], [0, 0, 1, 1], [], []>} : vector<16x128xf32>, vector<128x128xf32>, vector<16x128xf32> -> vector<16x128xf32>
    %c0_44 = arith.constant 0 : index
    %c0_45 = arith.constant 0 : index
    %77 = vector.load %arg9[%c0_44, %c0_45] : memref<1x128xf32, #tpu.memory_space<vmem>>, vector<1x128xf32>
    %78 = vector.broadcast %77 : vector<1x128xf32> to vector<16x128xf32>
    %79 = arith.addf %76, %78 : vector<16x128xf32>
    %cst_46 = arith.constant 0.000000e+00 : f32
    %80 = vector.broadcast %cst_46 : f32 to vector<16x128xf32>
    %81 = arith.maximumf %79, %80 : vector<16x128xf32>
    %c0_47 = arith.constant 0 : index
    %c0_48 = arith.constant 0 : index
    %82 = vector.load %arg10[%c0_47, %c0_48] : memref<128x128xf32, #tpu.memory_space<vmem>>, vector<128x128xf32>
    %cst_49 = arith.constant dense<0.000000e+00> : vector<16x128xf32>
    %83 = tpu.matmul %81, %82, %cst_49 {dimension_numbers = #tpu.dot_dimension_numbers<[1], [0], [0], [1], [0, 0, 1, 1], [], []>} : vector<16x128xf32>, vector<128x128xf32>, vector<16x128xf32> -> vector<16x128xf32>
    %c0_50 = arith.constant 0 : index
    %c0_51 = arith.constant 0 : index
    %84 = vector.load %arg11[%c0_50, %c0_51] : memref<1x128xf32, #tpu.memory_space<vmem>>, vector<1x128xf32>
    %85 = vector.broadcast %84 : vector<1x128xf32> to vector<16x128xf32>
    %86 = arith.addf %83, %85 : vector<16x128xf32>
    %c0_52 = arith.constant 0 : index
    %c0_53 = arith.constant 0 : index
    %87 = vector.load %arg12[%c0_52, %c0_53] : memref<16x128xf32, #tpu.memory_space<vmem>>, vector<16x128xf32>
    tpu.vector_store %arg12[%c0_52, %c0_53], %86 {strides = array<i32>} : memref<16x128xf32, #tpu.memory_space<vmem>>, vector<16x128xf32>,
    return
  }
  func.func @transform_0(%arg0: i32) -> (i32, i32) {
    %c0_i32 = arith.constant 0 : i32
    %c0_i32_0 = arith.constant 0 : i32
    return %arg0, %c0_i32 : i32, i32
  }
  func.func @transform_1(%arg0: i32) -> (i32, i32) {
    %c0_i32 = arith.constant 0 : i32
    %c0_i32_0 = arith.constant 0 : i32
    %c0_i32_1 = arith.constant 0 : i32
    return %c0_i32, %c0_i32_0 : i32, i32
  }
  func.func @transform_2(%arg0: i32) -> (i32, i32) {
    %c0_i32 = arith.constant 0 : i32
    %c0_i32_0 = arith.constant 0 : i32
    %c0_i32_1 = arith.constant 0 : i32
    return %c0_i32, %c0_i32_0 : i32, i32
  }
  func.func @transform_3(%arg0: i32) -> (i32, i32) {
    %c0_i32 = arith.constant 0 : i32
    %c0_i32_0 = arith.constant 0 : i32
    %c0_i32_1 = arith.constant 0 : i32
    return %c0_i32, %c0_i32_0 : i32, i32
  }
  func.func @transform_4(%arg0: i32) -> (i32, i32) {
    %c0_i32 = arith.constant 0 : i32
    %c0_i32_0 = arith.constant 0 : i32
    %c0_i32_1 = arith.constant 0 : i32
    return %c0_i32, %c0_i32_0 : i32, i32
  }
  func.func @transform_5(%arg0: i32) -> (i32, i32) {
    %c0_i32 = arith.constant 0 : i32
    %c0_i32_0 = arith.constant 0 : i32
    %c0_i32_1 = arith.constant 0 : i32
    return %c0_i32, %c0_i32_0 : i32, i32
  }
  func.func @transform_6(%arg0: i32) -> (i32, i32) {
    %c0_i32 = arith.constant 0 : i32
    %c0_i32_0 = arith.constant 0 : i32
    %c0_i32_1 = arith.constant 0 : i32
    return %c0_i32, %c0_i32_0 : i32, i32
  }
  func.func @transform_7(%arg0: i32) -> (i32, i32) {
    %c0_i32 = arith.constant 0 : i32
    %c0_i32_0 = arith.constant 0 : i32
    %c0_i32_1 = arith.constant 0 : i32
    return %c0_i32, %c0_i32_0 : i32, i32
  }
  func.func @transform_8(%arg0: i32) -> (i32, i32) {
    %c0_i32 = arith.constant 0 : i32
    %c0_i32_0 = arith.constant 0 : i32
    %c0_i32_1 = arith.constant 0 : i32
    return %c0_i32, %c0_i32_0 : i32, i32
  }
  func.func @transform_9(%arg0: i32) -> (i32, i32) {
    %c0_i32 = arith.constant 0 : i32
    %c0_i32_0 = arith.constant 0 : i32
    %c0_i32_1 = arith.constant 0 : i32
    return %c0_i32, %c0_i32_0 : i32, i32
  }
  func.func @transform_10(%arg0: i32) -> (i32, i32) {
    %c0_i32 = arith.constant 0 : i32
    %c0_i32_0 = arith.constant 0 : i32
    %c0_i32_1 = arith.constant 0 : i32
    return %c0_i32, %c0_i32_0 : i32, i32
  }
  func.func @transform_11(%arg0: i32) -> (i32, i32) {
    %c0_i32 = arith.constant 0 : i32
    %c0_i32_0 = arith.constant 0 : i32
    return %arg0, %c0_i32 : i32, i32
  }
  func.func @transform_12(%arg0: i32) -> (i32, i32) {
    %c0_i32 = arith.constant 0 : i32
    %c0_i32_0 = arith.constant 0 : i32
    %c0_i32_1 = arith.constant 0 : i32
    return %c0_i32, %c0_i32_0 : i32, i32
  }
  func.func @transform_13(%arg0: i32) -> (i32, i32) {
    %c0_i32 = arith.constant 0 : i32
    %c0_i32_0 = arith.constant 0 : i32
    %c0_i32_1 = arith.constant 0 : i32
    return %c0_i32, %c0_i32_0 : i32, i32
  }
}

</mosaic_0001>

<llo_original>
// kernel: tpu_custom_call.1
$region0: #{tpu_custom_call.1}
  #allocation0 [shape = 'u32[]', space=smem, size = 0x4, offset = 0x4, fixed_abs, tag = 'smem constant byte address 0x4 - core index']
  #allocation1 [shape = 'u32[144,128]{1,0:T(1,128)}', space=vmem, size = 0x12000, scoped, tag = 'internal scratch']
  #allocation2 [shape = 'f32[16,128]{1,0:T(8,128)}', space=vmem, size = 0x2000, scoped, tag = 'scratch operand']
  #allocation3 [shape = 'f32[8,128]{1,0:T(8,128)}', space=vmem, size = 0x1000, scoped, tag = 'scratch operand']
  #allocation4 [shape = 'f32[8,128]{1,0:T(8,128)}', space=vmem, size = 0x1000, scoped, tag = 'scratch operand']
  %s0 = inlined_call_operand.hbm [shape: f32[16,128], index: 0, kind: input, shape index: {}]
  %s1 = inlined_call_operand.hbm [shape: f32[8,128], index: 1, kind: input, shape index: {}]
  %s2 = inlined_call_operand.hbm [shape: f32[8,128], index: 2, kind: input, shape index: {}]
  %s3 = inlined_call_operand.hbm [shape: f32[128,512], index: 3, kind: input, shape index: {}]
  %s4 = inlined_call_operand.hbm [shape: f32[128,512], index: 4, kind: input, shape index: {}]
  %s5 = inlined_call_operand.hbm [shape: f32[128,128], index: 5, kind: input, shape index: {}]
  %s6 = inlined_call_operand.vmem [shape: f32[1,128], index: 6, kind: input, shape index: {}]
  %s7 = inlined_call_operand.hbm [shape: f32[128,128], index: 7, kind: input, shape index: {}]
  %s8 = inlined_call_operand.vmem [shape: f32[1,128], index: 8, kind: input, shape index: {}]
  %s9 = inlined_call_operand.hbm [shape: f32[128,128], index: 9, kind: input, shape index: {}]
  %s10 = inlined_call_operand.vmem [shape: f32[1,128], index: 10, kind: input, shape index: {}]
  %s11 = inlined_call_operand.hbm [shape: f32[16,128], index: 11, kind: output, shape index: {0}]
  %s12 = inlined_call_operand.hbm [shape: f32[8,128], index: 12, kind: output, shape index: {1}]
  %s13 = inlined_call_operand.hbm [shape: f32[8,128], index: 13, kind: output, shape index: {2}]
  %14 = xla_tuple %s11, %s12, %s13
  %s15 = sld [smem:[#allocation0]]
  $region106: #{tpu_custom_call.1} parent=0
    _
  %s17 = ssub.s32 1, %s15
  %s18 = scalar_select 0, %s17, %s15
  $region1: #{tpu_custom_call.1} parent=0
    #allocation5 [shape = 'u8[8192]{0}', space=vmem, size = 0x2000, scoped, tag = 'input window, operand 0, single buffered']
    #allocation6 [shape = 's32[1]{0}', space=sflag, size = 0x4, scoped, tag = 'scoped memory for tpu_custom_call.1']
    #allocation7 [shape = 's32[1]{0}', space=sflag, size = 0x4, scoped, tag = 'scoped memory for tpu_custom_call.1']
    #allocation8 [shape = 'u8[4096]{0}', space=vmem, size = 0x1000, scoped, tag = 'input window, operand 1, single buffered']
    #allocation9 [shape = 's32[1]{0}', space=sflag, size = 0x4, scoped, tag = 'scoped memory for tpu_custom_call.1']
    #allocation10 [shape = 'u8[4096]{0}', space=vmem, size = 0x1000, scoped, tag = 'input window, operand 2, single buffered']
    #allocation11 [shape = 'u8[262144]{0}', space=vmem, size = 0x40000, scoped, tag = 'input window, operand 3, single buffered']
    #allocation12 [shape = 's32[1]{0}', space=sflag, size = 0x4, scoped, tag = 'scoped memory for tpu_custom_call.1']
    #allocation13 [shape = 'u8[262144]{0}', space=vmem, size = 0x40000, scoped, tag = 'input window, operand 4, single buffered']
    #allocation14 [shape = 'u8[65536]{0}', space=vmem, size = 0x10000, scoped, tag = 'input window, operand 5, single buffered']
    #allocation15 [shape = 's32[1]{0}', space=sflag, size = 0x4, scoped, tag = 'scoped memory for tpu_custom_call.1']
    #allocation16 [shape = 'u8[65536]{0}', space=vmem, size = 0x10000, scoped, tag = 'input window, operand 7, single buffered']
    #allocation17 [shape = 'u8[65536]{0}', space=vmem, size = 0x10000, scoped, tag = 'input window, operand 9, single buffered']
    #allocation18 [shape = 's32[1]{0}', space=sflag, size = 0x4, scoped, tag = 'scoped memory for tpu_custom_call.1']
    #allocation19 [shape = 'u8[8192]{0}', space=vmem, size = 0x2000, scoped, tag = 'output window, operand 0, single buffered']
    #allocation20 [shape = 'u8[4096]{0}', space=vmem, size = 0x1000, scoped, tag = 'output window, operand 1, single buffered']
    #allocation21 [shape = 's32[1]{0}', space=sflag, size = 0x4, scoped, tag = 'scoped memory for tpu_custom_call.1']
    #allocation22 [shape = 'u8[4096]{0}', space=vmem, size = 0x1000, scoped, tag = 'output window, operand 2, single buffered']
    %19 = vsyncpa [#allocation6], 0
    %20 = vsyncpa [#allocation9], 0
    %21 = vsyncpa [#allocation12], 0
    %22 = vsyncpa [#allocation15], 0
    %23 = vsyncpa [#allocation18], 0
    %24 = vsyncpa [#allocation7], 0
    %25 = vsyncpa [#allocation21], 0
    // Predicated region
    $region2: #{tpu_custom_call.1} parent=1 // pred_check
      _
    $region3: #{tpu_custom_call.1} parent=1 // pred_check_branch
      %27 = sbr.rel (0) target = $region5
    $region4: #{tpu_custom_call.1} parent=1 // pred_region
      %s29 = ssub.s32 256, 256
      %30 = vsyncadd [#allocation6], %s29
      %s31 = sshll.u32 [#allocation5], 4
      %s32 = int_to_ptr.vmem [resolvable:$true] %s31
      %37 = dma.hbm_to_vmem [thread:$0]  %s0, 256, %s32, [#allocation6], 128, 128, 8
    $region5: #{tpu_custom_call.1} parent=1 // pred_fallthru
      _
    // Predicated region
    $region6: #{tpu_custom_call.1} parent=1 // pred_check
      _
    $region7: #{tpu_custom_call.1} parent=1 // pred_check_branch
      %39 = sbr.rel (0) target = $region9
    $region8: #{tpu_custom_call.1} parent=1 // pred_region
      %s41 = ssub.s32 128, 128
      %42 = vsyncadd [#allocation9], %s41
      %s44 = sshll.u32 [#allocation8], 4
      %s45 = int_to_ptr.vmem [resolvable:$true] %s44
      %47 = dma.hbm_to_vmem [thread:$0]  %s1, 128, %s45, [#allocation9]
    $region9: #{tpu_custom_call.1} parent=1 // pred_fallthru
      _
    // Predicated region
    $region10: #{tpu_custom_call.1} parent=1 // pred_check
      _
    $region11: #{tpu_custom_call.1} parent=1 // pred_check_branch
      %49 = sbr.rel (0) target = $region13
    $region12: #{tpu_custom_call.1} parent=1 // pred_region
      %s51 = ssub.s32 128, 128
      %52 = vsyncadd [#allocation9], %s51
      %s54 = sshll.u32 [#allocation10], 4
      %s55 = int_to_ptr.vmem [resolvable:$true] %s54
      %57 = dma.hbm_to_vmem [thread:$0]  %s2, 128, %s55, [#allocation9]
    $region13: #{tpu_custom_call.1} parent=1 // pred_fallthru
      _
    // Predicated region
    $region14: #{tpu_custom_call.1} parent=1 // pred_check
      _
    $region15: #{tpu_custom_call.1} parent=1 // pred_check_branch
      %59 = sbr.rel (0) target = $region17
    $region16: #{tpu_custom_call.1} parent=1 // pred_region
      %s61 = ssub.s32 8192, 8192
      %62 = vsyncadd [#allocation12], %s61
      %s63 = sshll.u32 [#allocation11], 4
      %s64 = int_to_ptr.vmem [resolvable:$true] %s63
      %69 = dma.hbm_to_vmem [thread:$0]  %s3, 8192, %s64, [#allocation12], 512, 512, 32
    $region17: #{tpu_custom_call.1} parent=1 // pred_fallthru
      _
    // Predicated region
    $region18: #{tpu_custom_call.1} parent=1 // pred_check
      _
    $region19: #{tpu_custom_call.1} parent=1 // pred_check_branch
      %71 = sbr.rel (0) target = $region21
    $region20: #{tpu_custom_call.1} parent=1 // pred_region
      %s73 = ssub.s32 8192, 8192
      %74 = vsyncadd [#allocation12], %s73
      %s75 = sshll.u32 [#allocation13], 4
      %s76 = int_to_ptr.vmem [resolvable:$true] %s75
      %81 = dma.hbm_to_vmem [thread:$0]  %s4, 8192, %s76, [#allocation12], 512, 512, 32
    $region21: #{tpu_custom_call.1} parent=1 // pred_fallthru
      _
    // Predicated region
    $region22: #{tpu_custom_call.1} parent=1 // pred_check
      _
    $region23: #{tpu_custom_call.1} parent=1 // pred_check_branch
      %83 = sbr.rel (0) target = $region25
    $region24: #{tpu_custom_call.1} parent=1 // pred_region
      %s85 = ssub.s32 2048, 2048
      %86 = vsyncadd [#allocation15], %s85
      %s87 = sshll.u32 [#allocation14], 4
      %s88 = int_to_ptr.vmem [resolvable:$true] %s87
      %93 = dma.hbm_to_vmem [thread:$0]  %s5, 2048, %s88, [#allocation15], 128, 128, 8
    $region25: #{tpu_custom_call.1} parent=1 // pred_fallthru
      _
    // Predicated region
    $region26: #{tpu_custom_call.1} parent=1 // pred_check
      _
    $region27: #{tpu_custom_call.1} parent=1 // pred_check_branch
      %95 = sbr.rel (0) target = $region29
    $region28: #{tpu_custom_call.1} parent=1 // pred_region
      _
    $region29: #{tpu_custom_call.1} parent=1 // pred_fallthru
      _
    // Predicated region
    $region30: #{tpu_custom_call.1} parent=1 // pred_check
      _
    $region31: #{tpu_custom_call.1} parent=1 // pred_check_branch
      %97 = sbr.rel (0) target = $region33
    $region32: #{tpu_custom_call.1} parent=1 // pred_region
      %s99 = ssub.s32 2048, 2048
      %100 = vsyncadd [#allocation15], %s99
      %s101 = sshll.u32 [#allocation16], 4
      %s102 = int_to_ptr.vmem [resolvable:$true] %s101
      %107 = dma.hbm_to_vmem [thread:$0]  %s7, 2048, %s102, [#allocation15], 128, 128, 8
    $region33: #{tpu_custom_call.1} parent=1 // pred_fallthru
      _
    // Predicated region
    $region34: #{tpu_custom_call.1} parent=1 // pred_check
      _
    $region35: #{tpu_custom_call.1} parent=1 // pred_check_branch
      %109 = sbr.rel (0) target = $region37
    $region36: #{tpu_custom_call.1} parent=1 // pred_region
      _
    $region37: #{tpu_custom_call.1} parent=1 // pred_fallthru
      _
    // Predicated region
    $region38: #{tpu_custom_call.1} parent=1 // pred_check
      _
    $region39: #{tpu_custom_call.1} parent=1 // pred_check_branch
      %111 = sbr.rel (0) target = $region41
    $region40: #{tpu_custom_call.1} parent=1 // pred_region
      %s113 = ssub.s32 2048, 2048
      %114 = vsyncadd [#allocation18], %s113
      %s115 = sshll.u32 [#allocation17], 4
      %s116 = int_to_ptr.vmem [resolvable:$true] %s115
      %121 = dma.hbm_to_vmem [thread:$0]  %s9, 2048, %s116, [#allocation18], 128, 128, 8
    $region41: #{tpu_custom_call.1} parent=1 // pred_fallthru
      _
    // Predicated region
    $region42: #{tpu_custom_call.1} parent=1 // pred_check
      _
    $region43: #{tpu_custom_call.1} parent=1 // pred_check_branch
      %123 = sbr.rel (0) target = $region45
    $region44: #{tpu_custom_call.1} parent=1 // pred_region
      _
    $region45: #{tpu_custom_call.1} parent=1 // pred_fallthru
      _
    // Predicated region
    $region46: #{tpu_custom_call.1} parent=1 // pred_check
      _
    $region47: #{tpu_custom_call.1} parent=1 // pred_check_branch
      %125 = sbr.rel (0) target = $region49
    $region48: #{tpu_custom_call.1} parent=1 // pred_region
      %126 = dma.done [#allocation6], 256
    $region49: #{tpu_custom_call.1} parent=1 // pred_fallthru
      _
    // Predicated region
    $region50: #{tpu_custom_call.1} parent=1 // pred_check
      _
    $region51: #{tpu_custom_call.1} parent=1 // pred_check_branch
      %128 = sbr.rel (0) target = $region53
    $region52: #{tpu_custom_call.1} parent=1 // pred_region
      %129 = dma.done [#allocation9], 128
    $region53: #{tpu_custom_call.1} parent=1 // pred_fallthru
      _
    // Predicated region
    $region54: #{tpu_custom_call.1} parent=1 // pred_check
      _
    $region55: #{tpu_custom_call.1} parent=1 // pred_check_branch
      %131 = sbr.rel (0) target = $region57
    $region56: #{tpu_custom_call.1} parent=1 // pred_region
      %132 = dma.done [#allocation9], 128
    $region57: #{tpu_custom_call.1} parent=1 // pred_fallthru
      _
    // Predicated region
    $region58: #{tpu_custom_call.1} parent=1 // pred_check
      _
    $region59: #{tpu_custom_call.1} parent=1 // pred_check_branch
      %134 = sbr.rel (0) target = $region61
    $region60: #{tpu_custom_call.1} parent=1 // pred_region
      %135 = dma.done [#allocation12], 8192
    $region61: #{tpu_custom_call.1} parent=1 // pred_fallthru
      _
    // Predicated region
    $region62: #{tpu_custom_call.1} parent=1 // pred_check
      _
    $region63: #{tpu_custom_call.1} parent=1 // pred_check_branch
      %137 = sbr.rel (0) target = $region65
    $region64: #{tpu_custom_call.1} parent=1 // pred_region
      %138 = dma.done [#allocation12], 8192
    $region65: #{tpu_custom_call.1} parent=1 // pred_fallthru
      _
    // Predicated region
    $region66: #{tpu_custom_call.1} parent=1 // pred_check
      _
    $region67: #{tpu_custom_call.1} parent=1 // pred_check_branch
      %140 = sbr.rel (0) target = $region69
    $region68: #{tpu_custom_call.1} parent=1 // pred_region
      %141 = dma.done [#allocation15], 2048
    $region69: #{tpu_custom_call.1} parent=1 // pred_fallthru
      _
    // Predicated region
    $region70: #{tpu_custom_call.1} parent=1 // pred_check
      _
    $region71: #{tpu_custom_call.1} parent=1 // pred_check_branch
      %143 = sbr.rel (0) target = $region73
    $region72: #{tpu_custom_call.1} parent=1 // pred_region
      %144 = dma.done [#allocation15], 2048
    $region73: #{tpu_custom_call.1} parent=1 // pred_fallthru
      _
    // Predicated region
    $region74: #{tpu_custom_call.1} parent=1 // pred_check
      _
    $region75: #{tpu_custom_call.1} parent=1 // pred_check_branch
      %146 = sbr.rel (0) target = $region77
    $region76: #{tpu_custom_call.1} parent=1 // pred_region
      %147 = dma.done [#allocation18], 2048
    $region77: #{tpu_custom_call.1} parent=1 // pred_fallthru
      _
    %p148 = scmp.eq.s32.totalorder 0, 0
    // Predicated region
    $region78: #{tpu_custom_call.1} parent=1 // pred_check
      %p149 = pneg %p148
    $region79: #{tpu_custom_call.1} parent=1 // pred_check_branch
      %151 = sbr.rel (%p149) target = $region81
    $region80: #{tpu_custom_call.1} parent=1 // pred_region
      %v152 = vld [vmem:[#allocation8] sm:$0xff]
      %153 = vst [vmem:[#allocation3] sm:$0xff] %v152
      %v154 = vld [vmem:[#allocation10] sm:$0xff]
      %155 = vst [vmem:[#allocation4] sm:$0xff] %v154
    $region81: #{tpu_custom_call.1} parent=1 // pred_fallthru
      _
    %v156 = vld [vmem:[#allocation3] sm:$0xff]
    %v157 = vld [vmem:[#allocation4] sm:$0xff]
    %v158 = vld [vmem:[#allocation5] sm:$0xff]
    %v159 = vld [vmem:[#allocation11] sm:$0xff]
    %v160 = vld [vmem:[#allocation11 + $0x8] sm:$0xff]
    %v161 = vld [vmem:[#allocation11 + $0x10] sm:$0xff]
    %v162 = vld [vmem:[#allocation11 + $0x18] sm:$0xff]
    %v163 = vld [vmem:[#allocation11 + $0x20] sm:$0xff]
    %v164 = vld [vmem:[#allocation11 + $0x28] sm:$0xff]
    %v165 = vld [vmem:[#allocation11 + $0x30] sm:$0xff]
    %v166 = vld [vmem:[#allocation11 + $0x38] sm:$0xff]
    %v167 = vld [vmem:[#allocation11 + $0x40] sm:$0xff]
    %v168 = vld [vmem:[#allocation11 + $0x48] sm:$0xff]
    %v169 = vld [vmem:[#allocation11 + $0x50] sm:$0xff]
    %v170 = vld [vmem:[#allocation11 + $0x58] sm:$0xff]
    %v171 = vld [vmem:[#allocation11 + $0x60] sm:$0xff]
    %v172 = vld [vmem:[#allocation11 + $0x68] sm:$0xff]
    %v173 = vld [vmem:[#allocation11 + $0x70] sm:$0xff]
    %v174 = vld [vmem:[#allocation11 + $0x78] sm:$0xff]
    %v175 = vld [vmem:[#allocation11 + $0x80] sm:$0xff]
    %v176 = vld [vmem:[#allocation11 + $0x88] sm:$0xff]
    %v177 = vld [vmem:[#allocation11 + $0x90] sm:$0xff]
    %v178 = vld [vmem:[#allocation11 + $0x98] sm:$0xff]
    %v179 = vld [vmem:[#allocation11 + $0xa0] sm:$0xff]
    %v180 = vld [vmem:[#allocation11 + $0xa8] sm:$0xff]
    %v181 = vld [vmem:[#allocation11 + $0xb0] sm:$0xff]
    %v182 = vld [vmem:[#allocation11 + $0xb8] sm:$0xff]
    %v183 = vld [vmem:[#allocation11 + $0xc0] sm:$0xff]
    %v184 = vld [vmem:[#allocation11 + $0xc8] sm:$0xff]
    %v185 = vld [vmem:[#allocation11 + $0xd0] sm:$0xff]
    %v186 = vld [vmem:[#allocation11 + $0xd8] sm:$0xff]
    %v187 = vld [vmem:[#allocation11 + $0xe0] sm:$0xff]
    %v188 = vld [vmem:[#allocation11 + $0xe8] sm:$0xff]
    %v189 = vld [vmem:[#allocation11 + $0xf0] sm:$0xff]
    %v190 = vld [vmem:[#allocation11 + $0xf8] sm:$0xff]
    %v191 = vld [vmem:[#allocation11 + $0x100] sm:$0xff]
    %v192 = vld [vmem:[#allocation11 + $0x108] sm:$0xff]
    %v193 = vld [vmem:[#allocation11 + $0x110] sm:$0xff]
    %v194 = vld [vmem:[#allocation11 + $0x118] sm:$0xff]
    %v195 = vld [vmem:[#allocation11 + $0x120] sm:$0xff]
    %v196 = vld [vmem:[#allocation11 + $0x128] sm:$0xff]
    %v197 = vld [vmem:[#allocation11 + $0x130] sm:$0xff]
    %v198 = vld [vmem:[#allocation11 + $0x138] sm:$0xff]
    %v199 = vld [vmem:[#allocation11 + $0x140] sm:$0xff]
    %v200 = vld [vmem:[#allocation11 + $0x148] sm:$0xff]
    %v201 = vld [vmem:[#allocation11 + $0x150] sm:$0xff]
    %v202 = vld [vmem:[#allocation11 + $0x158] sm:$0xff]
    %v203 = vld [vmem:[#allocation11 + $0x160] sm:$0xff]
    %v204 = vld [vmem:[#allocation11 + $0x168] sm:$0xff]
    %v205 = vld [vmem:[#allocation11 + $0x170] sm:$0xff]
    %v206 = vld [vmem:[#allocation11 + $0x178] sm:$0xff]
    %v207 = vld [vmem:[#allocation11 + $0x180] sm:$0xff]
    %v208 = vld [vmem:[#allocation11 + $0x188] sm:$0xff]
    %v209 = vld [vmem:[#allocation11 + $0x190] sm:$0xff]
    %v210 = vld [vmem:[#allocation11 + $0x198] sm:$0xff]
    %v211 = vld [vmem:[#allocation11 + $0x1a0] sm:$0xff]
    %v212 = vld [vmem:[#allocation11 + $0x1a8] sm:$0xff]
    %v213 = vld [vmem:[#allocation11 + $0x1b0] sm:$0xff]
    %v214 = vld [vmem:[#allocation11 + $0x1b8] sm:$0xff]
    %v215 = vld [vmem:[#allocation11 + $0x1c0] sm:$0xff]
    %v216 = vld [vmem:[#allocation11 + $0x1c8] sm:$0xff]
    %v217 = vld [vmem:[#allocation11 + $0x1d0] sm:$0xff]
    %v218 = vld [vmem:[#allocation11 + $0x1d8] sm:$0xff]
    %v219 = vld [vmem:[#allocation11 + $0x1e0] sm:$0xff]
    %v220 = vld [vmem:[#allocation11 + $0x1e8] sm:$0xff]
    %v221 = vld [vmem:[#allocation11 + $0x1f0] sm:$0xff]
    %v222 = vld [vmem:[#allocation11 + $0x1f8] sm:$0xff]
    %v223 = vld [vmem:[#allocation13] sm:$0xff]
    %v224 = vld [vmem:[#allocation13 + $0x8] sm:$0xff]
    %v225 = vld [vmem:[#allocation13 + $0x10] sm:$0xff]
    %v226 = vld [vmem:[#allocation13 + $0x18] sm:$0xff]
    %v227 = vld [vmem:[#allocation13 + $0x20] sm:$0xff]
    %v228 = vld [vmem:[#allocation13 + $0x28] sm:$0xff]
    %v229 = vld [vmem:[#allocation13 + $0x30] sm:$0xff]
    %v230 = vld [vmem:[#allocation13 + $0x38] sm:$0xff]
    %v231 = vld [vmem:[#allocation13 + $0x40] sm:$0xff]
    %v232 = vld [vmem:[#allocation13 + $0x48] sm:$0xff]
    %v233 = vld [vmem:[#allocation13 + $0x50] sm:$0xff]
    %v234 = vld [vmem:[#allocation13 + $0x58] sm:$0xff]
    %v235 = vld [vmem:[#allocation13 + $0x60] sm:$0xff]
    %v236 = vld [vmem:[#allocation13 + $0x68] sm:$0xff]
    %v237 = vld [vmem:[#allocation13 + $0x70] sm:$0xff]
    %v238 = vld [vmem:[#allocation13 + $0x78] sm:$0xff]
    %v239 = vld [vmem:[#allocation13 + $0x80] sm:$0xff]
    %v240 = vld [vmem:[#allocation13 + $0x88] sm:$0xff]
    %v241 = vld [vmem:[#allocation13 + $0x90] sm:$0xff]
    %v242 = vld [vmem:[#allocation13 + $0x98] sm:$0xff]
    %v243 = vld [vmem:[#allocation13 + $0xa0] sm:$0xff]
    %v244 = vld [vmem:[#allocation13 + $0xa8] sm:$0xff]
    %v245 = vld [vmem:[#allocation13 + $0xb0] sm:$0xff]
    %v246 = vld [vmem:[#allocation13 + $0xb8] sm:$0xff]
    %v247 = vld [vmem:[#allocation13 + $0xc0] sm:$0xff]
    %v248 = vld [vmem:[#allocation13 + $0xc8] sm:$0xff]
    %v249 = vld [vmem:[#allocation13 + $0xd0] sm:$0xff]
    %v250 = vld [vmem:[#allocation13 + $0xd8] sm:$0xff]
    %v251 = vld [vmem:[#allocation13 + $0xe0] sm:$0xff]
    %v252 = vld [vmem:[#allocation13 + $0xe8] sm:$0xff]
    %v253 = vld [vmem:[#allocation13 + $0xf0] sm:$0xff]
    %v254 = vld [vmem:[#allocation13 + $0xf8] sm:$0xff]
    %v255 = vld [vmem:[#allocation13 + $0x100] sm:$0xff]
    %v256 = vld [vmem:[#allocation13 + $0x108] sm:$0xff]
    %v257 = vld [vmem:[#allocation13 + $0x110] sm:$0xff]
    %v258 = vld [vmem:[#allocation13 + $0x118] sm:$0xff]
    %v259 = vld [vmem:[#allocation13 + $0x120] sm:$0xff]
    %v260 = vld [vmem:[#allocation13 + $0x128] sm:$0xff]
    %v261 = vld [vmem:[#allocation13 + $0x130] sm:$0xff]
    %v262 = vld [vmem:[#allocation13 + $0x138] sm:$0xff]
    %v263 = vld [vmem:[#allocation13 + $0x140] sm:$0xff]
    %v264 = vld [vmem:[#allocation13 + $0x148] sm:$0xff]
    %v265 = vld [vmem:[#allocation13 + $0x150] sm:$0xff]
    %v266 = vld [vmem:[#allocation13 + $0x158] sm:$0xff]
    %v267 = vld [vmem:[#allocation13 + $0x160] sm:$0xff]
    %v268 = vld [vmem:[#allocation13 + $0x168] sm:$0xff]
    %v269 = vld [vmem:[#allocation13 + $0x170] sm:$0xff]
    %v270 = vld [vmem:[#allocation13 + $0x178] sm:$0xff]
    %v271 = vld [vmem:[#allocation13 + $0x180] sm:$0xff]
    %v272 = vld [vmem:[#allocation13 + $0x188] sm:$0xff]
    %v273 = vld [vmem:[#allocation13 + $0x190] sm:$0xff]
    %v274 = vld [vmem:[#allocation13 + $0x198] sm:$0xff]
    %v275 = vld [vmem:[#allocation13 + $0x1a0] sm:$0xff]
    %v276 = vld [vmem:[#allocation13 + $0x1a8] sm:$0xff]
    %v277 = vld [vmem:[#allocation13 + $0x1b0] sm:$0xff]
    %v278 = vld [vmem:[#allocation13 + $0x1b8] sm:$0xff]
    %v279 = vld [vmem:[#allocation13 + $0x1c0] sm:$0xff]
    %v280 = vld [vmem:[#allocation13 + $0x1c8] sm:$0xff]
    %v281 = vld [vmem:[#allocation13 + $0x1d0] sm:$0xff]
    %v282 = vld [vmem:[#allocation13 + $0x1d8] sm:$0xff]
    %v283 = vld [vmem:[#allocation13 + $0x1e0] sm:$0xff]
    %v284 = vld [vmem:[#allocation13 + $0x1e8] sm:$0xff]
    %v285 = vld [vmem:[#allocation13 + $0x1f0] sm:$0xff]
    %v286 = vld [vmem:[#allocation13 + $0x1f8] sm:$0xff]
    %287 = vmatprep.subr.mxu0 %v224
    %288 = vmatpush1.msra.mxu0 %v223
    %289 = vmatprep.subr.mxu0 %v228
    %290 = vmatpush1.msra.mxu0 %v227
    %291 = vmatprep.subr.mxu0 %v232
    %292 = vmatpush1.msra.mxu0 %v231
    %293 = vmatprep.subr.mxu0 %v236
    %294 = vmatpush1.msra.mxu0 %v235
    %295 = vmatprep.subr.mxu0 %v240
    %296 = vmatpush1.msra.mxu0 %v239
    %297 = vmatprep.subr.mxu0 %v244
    %298 = vmatpush1.msra.mxu0 %v243
    %299 = vmatprep.subr.mxu0 %v248
    %300 = vmatpush1.msra.mxu0 %v247
    %301 = vmatprep.subr.mxu0 %v252
    %302 = vmatpush1.msra.mxu0 %v251
    %303 = vmatprep.subr.mxu0 %v256
    %304 = vmatpush1.msra.mxu0 %v255
    %305 = vmatprep.subr.mxu0 %v260
    %306 = vmatpush1.msra.mxu0 %v259
    %307 = vmatprep.subr.mxu0 %v264
    %308 = vmatpush1.msra.mxu0 %v263
    %309 = vmatprep.subr.mxu0 %v268
    %310 = vmatpush1.msra.mxu0 %v267
    %311 = vmatprep.subr.mxu0 %v272
    %312 = vmatpush1.msra.mxu0 %v271
    %313 = vmatprep.subr.mxu0 %v276
    %314 = vmatpush1.msra.mxu0 %v275
    %315 = vmatprep.subr.mxu0 %v280
    %316 = vmatpush1.msra.mxu0 %v279
    %317 = vmatprep.subr.mxu0 %v284
    %318 = vmatpush1.msra.mxu0 %v283
    %319 = vmatprep.subr.mxu0 0.0
    %320 = vmatpush1.msra.mxu0 0.0
    %321 = vmatprep.subr.mxu0 0.0
    %322 = vmatpush1.msra.mxu0 0.0
    %323 = vmatprep.subr.mxu0 0.0
    %324 = vmatpush1.msra.mxu0 0.0
    %325 = vmatprep.subr.mxu0 0.0
    %326 = vmatpush1.msra.mxu0 0.0
    %327 = vmatprep.subr.mxu0 0.0
    %328 = vmatpush1.msra.mxu0 0.0
    %329 = vmatprep.subr.mxu0 0.0
    %330 = vmatpush1.msra.mxu0 0.0
    %331 = vmatprep.subr.mxu0 0.0
    %332 = vmatpush1.msra.mxu0 0.0
    %333 = vmatprep.subr.mxu0 0.0
    %334 = vmatpush1.msra.mxu0 0.0
    %335 = vmatprep.subr.mxu0 0.0
    %336 = vmatpush1.msra.mxu0 0.0
    %337 = vmatprep.subr.mxu0 0.0
    %338 = vmatpush1.msra.mxu0 0.0
    %339 = vmatprep.subr.mxu0 0.0
    %340 = vmatpush1.msra.mxu0 0.0
    %341 = vmatprep.subr.mxu0 0.0
    %342 = vmatpush1.msra.mxu0 0.0
    %343 = vmatprep.subr.mxu0 0.0
    %344 = vmatpush1.msra.mxu0 0.0
    %345 = vmatprep.subr.mxu0 0.0
    %346 = vmatpush1.msra.mxu0 0.0
    %347 = vmatprep.subr.mxu0 0.0
    %348 = vmatpush1.msra.mxu0 0.0
    %349 = vmatprep.subr.mxu0 0.0
    %350 = vmatpush1.msra.mxu0 0.0
    %351 = vmatprep.mubr.f32.mxu0 0.0
    %352 = vmatmul.mubr.f32.gmra.mrb[0].mxu0 %v156
    %v353 = vpop.f32.mrb[0].mxu0
    %v354 = vadd.f32 0.0, %v353
    %v355 = vpop.f32.mrb[0].mxu0
    %v356 = vadd.f32 0.0, %v355
    %357 = vdwg.mxu0
    %358 = vmatprep.subr.mxu0 %v226
    %359 = vmatpush1.msra.mxu0 %v225
    %360 = vmatprep.subr.mxu0 %v230
    %361 = vmatpush1.msra.mxu0 %v229
    %362 = vmatprep.subr.mxu0 %v234
    %363 = vmatpush1.msra.mxu0 %v233
    %364 = vmatprep.subr.mxu0 %v238
    %365 = vmatpush1.msra.mxu0 %v237
    %366 = vmatprep.subr.mxu0 %v242
    %367 = vmatpush1.msra.mxu0 %v241
    %368 = vmatprep.subr.mxu0 %v246
    %369 = vmatpush1.msra.mxu0 %v245
    %370 = vmatprep.subr.mxu0 %v250
    %371 = vmatpush1.msra.mxu0 %v249
    %372 = vmatprep.subr.mxu0 %v254
    %373 = vmatpush1.msra.mxu0 %v253
    %374 = vmatprep.subr.mxu0 %v258
    %375 = vmatpush1.msra.mxu0 %v257
    %376 = vmatprep.subr.mxu0 %v262
    %377 = vmatpush1.msra.mxu0 %v261
    %378 = vmatprep.subr.mxu0 %v266
    %379 = vmatpush1.msra.mxu0 %v265
    %380 = vmatprep.subr.mxu0 %v270
    %381 = vmatpush1.msra.mxu0 %v269
    %382 = vmatprep.subr.mxu0 %v274
    %383 = vmatpush1.msra.mxu0 %v273
    %384 = vmatprep.subr.mxu0 %v278
    %385 = vmatpush1.msra.mxu0 %v277
    %386 = vmatprep.subr.mxu0 %v282
    %387 = vmatpush1.msra.mxu0 %v281
    %388 = vmatprep.subr.mxu0 %v286
    %389 = vmatpush1.msra.mxu0 %v285
    %390 = vmatprep.subr.mxu0 0.0
    %391 = vmatpush1.msra.mxu0 0.0
    %392 = vmatprep.subr.mxu0 0.0
    %393 = vmatpush1.msra.mxu0 0.0
    %394 = vmatprep.subr.mxu0 0.0
    %395 = vmatpush1.msra.mxu0 0.0
    %396 = vmatprep.subr.mxu0 0.0
    %397 = vmatpush1.msra.mxu0 0.0
    %398 = vmatprep.subr.mxu0 0.0
    %399 = vmatpush1.msra.mxu0 0.0
    %400 = vmatprep.subr.mxu0 0.0
    %401 = vmatpush1.msra.mxu0 0.0
    %402 = vmatprep.subr.mxu0 0.0
    %403 = vmatpush1.msra.mxu0 0.0
    %404 = vmatprep.subr.mxu0 0.0
    %405 = vmatpush1.msra.mxu0 0.0
    %406 = vmatprep.subr.mxu0 0.0
    %407 = vmatpush1.msra.mxu0 0.0
    %408 = vmatprep.subr.mxu0 0.0
    %409 = vmatpush1.msra.mxu0 0.0
    %410 = vmatprep.subr.mxu0 0.0
    %411 = vmatpush1.msra.mxu0 0.0
    %412 = vmatprep.subr.mxu0 0.0
    %413 = vmatpush1.msra.mxu0 0.0
    %414 = vmatprep.subr.mxu0 0.0
    %415 = vmatpush1.msra.mxu0 0.0
    %416 = vmatprep.subr.mxu0 0.0
    %417 = vmatpush1.msra.mxu0 0.0
    %418 = vmatprep.subr.mxu0 0.0
    %419 = vmatpush1.msra.mxu0 0.0
    %420 = vmatprep.subr.mxu0 0.0
    %421 = vmatpush1.msra.mxu0 0.0
    %422 = vmatprep.mubr.f32.mxu0 0.0
    %423 = vmatmul.mubr.f32.gmra.mrb[0].mxu0 %v156
    %v424 = vpop.f32.mrb[0].mxu0
    %v425 = vadd.f32 0.0, %v424
    %v426 = vpop.f32.mrb[0].mxu0
    %v427 = vadd.f32 0.0, %v426
    %428 = vdwg.mxu0
    %429 = vmatprep.subr.mxu0 %v160
    %430 = vmatpush1.msra.mxu0 %v159
    %431 = vmatprep.subr.mxu0 %v164
    %432 = vmatpush1.msra.mxu0 %v163
    %433 = vmatprep.subr.mxu0 %v168
    %434 = vmatpush1.msra.mxu0 %v167
    %435 = vmatprep.subr.mxu0 %v172
    %436 = vmatpush1.msra.mxu0 %v171
    %437 = vmatprep.subr.mxu0 %v176
    %438 = vmatpush1.msra.mxu0 %v175
    %439 = vmatprep.subr.mxu0 %v180
    %440 = vmatpush1.msra.mxu0 %v179
    %441 = vmatprep.subr.mxu0 %v184
    %442 = vmatpush1.msra.mxu0 %v183
    %443 = vmatprep.subr.mxu0 %v188
    %444 = vmatpush1.msra.mxu0 %v187
    %445 = vmatprep.subr.mxu0 %v192
    %446 = vmatpush1.msra.mxu0 %v191
    %447 = vmatprep.subr.mxu0 %v196
    %448 = vmatpush1.msra.mxu0 %v195
    %449 = vmatprep.subr.mxu0 %v200
    %450 = vmatpush1.msra.mxu0 %v199
    %451 = vmatprep.subr.mxu0 %v204
    %452 = vmatpush1.msra.mxu0 %v203
    %453 = vmatprep.subr.mxu0 %v208
    %454 = vmatpush1.msra.mxu0 %v207
    %455 = vmatprep.subr.mxu0 %v212
    %456 = vmatpush1.msra.mxu0 %v211
    %457 = vmatprep.subr.mxu0 %v216
    %458 = vmatpush1.msra.mxu0 %v215
    %459 = vmatprep.subr.mxu0 %v220
    %460 = vmatpush1.msra.mxu0 %v219
    %461 = vmatprep.subr.mxu0 0.0
    %462 = vmatpush1.msra.mxu0 0.0
    %463 = vmatprep.subr.mxu0 0.0
    %464 = vmatpush1.msra.mxu0 0.0
    %465 = vmatprep.subr.mxu0 0.0
    %466 = vmatpush1.msra.mxu0 0.0
    %467 = vmatprep.subr.mxu0 0.0
    %468 = vmatpush1.msra.mxu0 0.0
    %469 = vmatprep.subr.mxu0 0.0
    %470 = vmatpush1.msra.mxu0 0.0
    %471 = vmatprep.subr.mxu0 0.0
    %472 = vmatpush1.msra.mxu0 0.0
    %473 = vmatprep.subr.mxu0 0.0
    %474 = vmatpush1.msra.mxu0 0.0
    %475 = vmatprep.subr.mxu0 0.0
    %476 = vmatpush1.msra.mxu0 0.0
    %477 = vmatprep.subr.mxu0 0.0
    %478 = vmatpush1.msra.mxu0 0.0
    %479 = vmatprep.subr.mxu0 0.0
    %480 = vmatpush1.msra.mxu0 0.0
    %481 = vmatprep.subr.mxu0 0.0
    %482 = vmatpush1.msra.mxu0 0.0
    %483 = vmatprep.subr.mxu0 0.0
    %484 = vmatpush1.msra.mxu0 0.0
    %485 = vmatprep.subr.mxu0 0.0
    %486 = vmatpush1.msra.mxu0 0.0
    %487 = vmatprep.subr.mxu0 0.0
    %488 = vmatpush1.msra.mxu0 0.0
    %489 = vmatprep.subr.mxu0 0.0
    %490 = vmatpush1.msra.mxu0 0.0
    %491 = vmatprep.subr.mxu0 0.0
    %492 = vmatpush1.msra.mxu0 0.0
    %493 = vmatprep.mubr.f32.mxu0 0.0
    %494 = vmatmul.mubr.f32.gmra.mrb[0].mxu0 %v158
    %v495 = vpop.f32.mrb[0].mxu0
    %v496 = vadd.f32 %v354, %v495
    %v497 = vpop.f32.mrb[0].mxu0
    %v498 = vadd.f32 %v356, %v497
    %499 = vdwg.mxu0
    %500 = vmatprep.subr.mxu0 %v162
    %501 = vmatpush1.msra.mxu0 %v161
    %502 = vmatprep.subr.mxu0 %v166
    %503 = vmatpush1.msra.mxu0 %v165
    %504 = vmatprep.subr.mxu0 %v170
    %505 = vmatpush1.msra.mxu0 %v169
    %506 = vmatprep.subr.mxu0 %v174
    %507 = vmatpush1.msra.mxu0 %v173
    %508 = vmatprep.subr.mxu0 %v178
    %509 = vmatpush1.msra.mxu0 %v177
    %510 = vmatprep.subr.mxu0 %v182
    %511 = vmatpush1.msra.mxu0 %v181
    %512 = vmatprep.subr.mxu0 %v186
    %513 = vmatpush1.msra.mxu0 %v185
    %514 = vmatprep.subr.mxu0 %v190
    %515 = vmatpush1.msra.mxu0 %v189
    %516 = vmatprep.subr.mxu0 %v194
    %517 = vmatpush1.msra.mxu0 %v193
    %518 = vmatprep.subr.mxu0 %v198
    %519 = vmatpush1.msra.mxu0 %v197
    %520 = vmatprep.subr.mxu0 %v202
    %521 = vmatpush1.msra.mxu0 %v201
    %522 = vmatprep.subr.mxu0 %v206
    %523 = vmatpush1.msra.mxu0 %v205
    %524 = vmatprep.subr.mxu0 %v210
    %525 = vmatpush1.msra.mxu0 %v209
    %526 = vmatprep.subr.mxu0 %v214
    %527 = vmatpush1.msra.mxu0 %v213
    %528 = vmatprep.subr.mxu0 %v218
    %529 = vmatpush1.msra.mxu0 %v217
    %530 = vmatprep.subr.mxu0 %v222
    %531 = vmatpush1.msra.mxu0 %v221
    %532 = vmatprep.subr.mxu0 0.0
    %533 = vmatpush1.msra.mxu0 0.0
    %534 = vmatprep.subr.mxu0 0.0
    %535 = vmatpush1.msra.mxu0 0.0
    %536 = vmatprep.subr.mxu0 0.0
    %537 = vmatpush1.msra.mxu0 0.0
    %538 = vmatprep.subr.mxu0 0.0
    %539 = vmatpush1.msra.mxu0 0.0
    %540 = vmatprep.subr.mxu0 0.0
    %541 = vmatpush1.msra.mxu0 0.0
    %542 = vmatprep.subr.mxu0 0.0
    %543 = vmatpush1.msra.mxu0 0.0
    %544 = vmatprep.subr.mxu0 0.0
    %545 = vmatpush1.msra.mxu0 0.0
    %546 = vmatprep.subr.mxu0 0.0
    %547 = vmatpush1.msra.mxu0 0.0
    %548 = vmatprep.subr.mxu0 0.0
    %549 = vmatpush1.msra.mxu0 0.0
    %550 = vmatprep.subr.mxu0 0.0
    %551 = vmatpush1.msra.mxu0 0.0
    %552 = vmatprep.subr.mxu0 0.0
    %553 = vmatpush1.msra.mxu0 0.0
    %554 = vmatprep.subr.mxu0 0.0
    %555 = vmatpush1.msra.mxu0 0.0
    %556 = vmatprep.subr.mxu0 0.0
    %557 = vmatpush1.msra.mxu0 0.0
    %558 = vmatprep.subr.mxu0 0.0
    %559 = vmatpush1.msra.mxu0 0.0
    %560 = vmatprep.subr.mxu0 0.0
    %561 = vmatpush1.msra.mxu0 0.0
    %562 = vmatprep.subr.mxu0 0.0
    %563 = vmatpush1.msra.mxu0 0.0
    %564 = vmatprep.mubr.f32.mxu0 0.0
    %565 = vmatmul.mubr.f32.gmra.mrb[0].mxu0 %v158
    %v566 = vpop.f32.mrb[0].mxu0
    %v567 = vadd.f32 %v425, %v566
    %v568 = vpop.f32.mrb[0].mxu0
    %v569 = vadd.f32 %v427, %v568
    %570 = vdwg.mxu0
    %v571 = vxor.u32 %v496, 2147483648
    %v572 = vxor.u32 %v498, 2147483648
    %v573 = vxor.u32 %v567, 2147483648
    %v574 = vmul.f32 %v571, 1.442695
    %v575 = vpow.pop %v574
    %v576 = vmul.f32 %v572, 1.442695
    %v577 = vpow.pop %v576
    %v578 = vmul.f32 %v573, 1.442695
    %v579 = vpow.pop %v578
    %v580 = vadd.f32 %v575, 1.0
    %v581 = vadd.f32 %v577, 1.0
    %v582 = vadd.f32 %v579, 1.0
    %v583 = vrcp.pop %v580
    %v584 = vmul.f32 1.0, %v583
    %v585 = vrcp.pop %v581
    %v586 = vmul.f32 1.0, %v585
    %v587 = vrcp.pop %v582
    %v588 = vmul.f32 1.0, %v587
    %v589 = vtanh.pop %v569
    %v590 = vmul.f32 %v586, %v157
    %v591 = vmul.f32 %v584, %v589
    %v592 = vadd.f32 %v590, %v591
    %v593 = vtanh.pop %v592
    %v594 = vmul.f32 %v588, %v593
    %v595 = vmax.f32 %v594, 0.0
    %596 = vst [vmem:[#allocation2] sm:$0xff] %v595
    %s597 = scalar_lea.vmem [#allocation5], 8
    %v598 = vld [vmem:[%s597] sm:$0xff]
    %v599 = vld [vmem:[#allocation11] sm:$0xff]
    %v600 = vld [vmem:[#allocation11 + $0x8] sm:$0xff]
    %v601 = vld [vmem:[#allocation11 + $0x10] sm:$0xff]
    %v602 = vld [vmem:[#allocation11 + $0x18] sm:$0xff]
    %v603 = vld [vmem:[#allocation11 + $0x20] sm:$0xff]
    %v604 = vld [vmem:[#allocation11 + $0x28] sm:$0xff]
    %v605 = vld [vmem:[#allocation11 + $0x30] sm:$0xff]
    %v606 = vld [vmem:[#allocation11 + $0x38] sm:$0xff]
    %v607 = vld [vmem:[#allocation11 + $0x40] sm:$0xff]
    %v608 = vld [vmem:[#allocation11 + $0x48] sm:$0xff]
    %v609 = vld [vmem:[#allocation11 + $0x50] sm:$0xff]
    %v610 = vld [vmem:[#allocation11 + $0x58] sm:$0xff]
    %v611 = vld [vmem:[#allocation11 + $0x60] sm:$0xff]
    %v612 = vld [vmem:[#allocation11 + $0x68] sm:$0xff]
    %v613 = vld [vmem:[#allocation11 + $0x70] sm:$0xff]
    %v614 = vld [vmem:[#allocation11 + $0x78] sm:$0xff]
    %v615 = vld [vmem:[#allocation11 + $0x80] sm:$0xff]
    %v616 = vld [vmem:[#allocation11 + $0x88] sm:$0xff]
    %v617 = vld [vmem:[#allocation11 + $0x90] sm:$0xff]
    %v618 = vld [vmem:[#allocation11 + $0x98] sm:$0xff]
    %v619 = vld [vmem:[#allocation11 + $0xa0] sm:$0xff]
    %v620 = vld [vmem:[#allocation11 + $0xa8] sm:$0xff]
    %v621 = vld [vmem:[#allocation11 + $0xb0] sm:$0xff]
    %v622 = vld [vmem:[#allocation11 + $0xb8] sm:$0xff]
    %v623 = vld [vmem:[#allocation11 + $0xc0] sm:$0xff]
    %v624 = vld [vmem:[#allocation11 + $0xc8] sm:$0xff]
    %v625 = vld [vmem:[#allocation11 + $0xd0] sm:$0xff]
    %v626 = vld [vmem:[#allocation11 + $0xd8] sm:$0xff]
    %v627 = vld [vmem:[#allocation11 + $0xe0] sm:$0xff]
    %v628 = vld [vmem:[#allocation11 + $0xe8] sm:$0xff]
    %v629 = vld [vmem:[#allocation11 + $0xf0] sm:$0xff]
    %v630 = vld [vmem:[#allocation11 + $0xf8] sm:$0xff]
    %v631 = vld [vmem:[#allocation11 + $0x100] sm:$0xff]
    %v632 = vld [vmem:[#allocation11 + $0x108] sm:$0xff]
    %v633 = vld [vmem:[#allocation11 + $0x110] sm:$0xff]
    %v634 = vld [vmem:[#allocation11 + $0x118] sm:$0xff]
    %v635 = vld [vmem:[#allocation11 + $0x120] sm:$0xff]
    %v636 = vld [vmem:[#allocation11 + $0x128] sm:$0xff]
    %v637 = vld [vmem:[#allocation11 + $0x130] sm:$0xff]
    %v638 = vld [vmem:[#allocation11 + $0x138] sm:$0xff]
    %v639 = vld [vmem:[#allocation11 + $0x140] sm:$0xff]
    %v640 = vld [vmem:[#allocation11 + $0x148] sm:$0xff]
    %v641 = vld [vmem:[#allocation11 + $0x150] sm:$0xff]
    %v642 = vld [vmem:[#allocation11 + $0x158] sm:$0xff]
    %v643 = vld [vmem:[#allocation11 + $0x160] sm:$0xff]
    %v644 = vld [vmem:[#allocation11 + $0x168] sm:$0xff]
    %v645 = vld [vmem:[#allocation11 + $0x170] sm:$0xff]
    %v646 = vld [vmem:[#allocation11 + $0x178] sm:$0xff]
    %v647 = vld [vmem:[#allocation11 + $0x180] sm:$0xff]
    %v648 = vld [vmem:[#allocation11 + $0x188] sm:$0xff]
    %v649 = vld [vmem:[#allocation11 + $0x190] sm:$0xff]
    %v650 = vld [vmem:[#allocation11 + $0x198] sm:$0xff]
    %v651 = vld [vmem:[#allocation11 + $0x1a0] sm:$0xff]
    %v652 = vld [vmem:[#allocation11 + $0x1a8] sm:$0xff]
    %v653 = vld [vmem:[#allocation11 + $0x1b0] sm:$0xff]
    %v654 = vld [vmem:[#allocation11 + $0x1b8] sm:$0xff]
    %v655 = vld [vmem:[#allocation11 + $0x1c0] sm:$0xff]
    %v656 = vld [vmem:[#allocation11 + $0x1c8] sm:$0xff]
    %v657 = vld [vmem:[#allocation11 + $0x1d0] sm:$0xff]
    %v658 = vld [vmem:[#allocation11 + $0x1d8] sm:$0xff]
    %v659 = vld [vmem:[#allocation11 + $0x1e0] sm:$0xff]
    %v660 = vld [vmem:[#allocation11 + $0x1e8] sm:$0xff]
    %v661 = vld [vmem:[#allocation11 + $0x1f0] sm:$0xff]
    %v662 = vld [vmem:[#allocation11 + $0x1f8] sm:$0xff]
    %v663 = vld [vmem:[#allocation13] sm:$0xff]
    %v664 = vld [vmem:[#allocation13 + $0x8] sm:$0xff]
    %v665 = vld [vmem:[#allocation13 + $0x10] sm:$0xff]
    %v666 = vld [vmem:[#allocation13 + $0x18] sm:$0xff]
    %v667 = vld [vmem:[#allocation13 + $0x20] sm:$0xff]
    %v668 = vld [vmem:[#allocation13 + $0x28] sm:$0xff]
    %v669 = vld [vmem:[#allocation13 + $0x30] sm:$0xff]
    %v670 = vld [vmem:[#allocation13 + $0x38] sm:$0xff]
    %v671 = vld [vmem:[#allocation13 + $0x40] sm:$0xff]
    %v672 = vld [vmem:[#allocation13 + $0x48] sm:$0xff]
    %v673 = vld [vmem:[#allocation13 + $0x50] sm:$0xff]
    %v674 = vld [vmem:[#allocation13 + $0x58] sm:$0xff]
    %v675 = vld [vmem:[#allocation13 + $0x60] sm:$0xff]
    %v676 = vld [vmem:[#allocation13 + $0x68] sm:$0xff]
    %v677 = vld [vmem:[#allocation13 + $0x70] sm:$0xff]
    %v678 = vld [vmem:[#allocation13 + $0x78] sm:$0xff]
    %v679 = vld [vmem:[#allocation13 + $0x80] sm:$0xff]
    %v680 = vld [vmem:[#allocation13 + $0x88] sm:$0xff]
    %v681 = vld [vmem:[#allocation13 + $0x90] sm:$0xff]
    %v682 = vld [vmem:[#allocation13 + $0x98] sm:$0xff]
    %v683 = vld [vmem:[#allocation13 + $0xa0] sm:$0xff]
    %v684 = vld [vmem:[#allocation13 + $0xa8] sm:$0xff]
    %v685 = vld [vmem:[#allocation13 + $0xb0] sm:$0xff]
    %v686 = vld [vmem:[#allocation13 + $0xb8] sm:$0xff]
    %v687 = vld [vmem:[#allocation13 + $0xc0] sm:$0xff]
    %v688 = vld [vmem:[#allocation13 + $0xc8] sm:$0xff]
    %v689 = vld [vmem:[#allocation13 + $0xd0] sm:$0xff]
    %v690 = vld [vmem:[#allocation13 + $0xd8] sm:$0xff]
    %v691 = vld [vmem:[#allocation13 + $0xe0] sm:$0xff]
    %v692 = vld [vmem:[#allocation13 + $0xe8] sm:$0xff]
    %v693 = vld [vmem:[#allocation13 + $0xf0] sm:$0xff]
    %v694 = vld [vmem:[#allocation13 + $0xf8] sm:$0xff]
    %v695 = vld [vmem:[#allocation13 + $0x100] sm:$0xff]
    %v696 = vld [vmem:[#allocation13 + $0x108] sm:$0xff]
    %v697 = vld [vmem:[#allocation13 + $0x110] sm:$0xff]
    %v698 = vld [vmem:[#allocation13 + $0x118] sm:$0xff]
    %v699 = vld [vmem:[#allocation13 + $0x120] sm:$0xff]
    %v700 = vld [vmem:[#allocation13 + $0x128] sm:$0xff]
    %v701 = vld [vmem:[#allocation13 + $0x130] sm:$0xff]
    %v702 = vld [vmem:[#allocation13 + $0x138] sm:$0xff]
    %v703 = vld [vmem:[#allocation13 + $0x140] sm:$0xff]
    %v704 = vld [vmem:[#allocation13 + $0x148] sm:$0xff]
    %v705 = vld [vmem:[#allocation13 + $0x150] sm:$0xff]
    %v706 = vld [vmem:[#allocation13 + $0x158] sm:$0xff]
    %v707 = vld [vmem:[#allocation13 + $0x160] sm:$0xff]
    %v708 = vld [vmem:[#allocation13 + $0x168] sm:$0xff]
    %v709 = vld [vmem:[#allocation13 + $0x170] sm:$0xff]
    %v710 = vld [vmem:[#allocation13 + $0x178] sm:$0xff]
    %v711 = vld [vmem:[#allocation13 + $0x180] sm:$0xff]
    %v712 = vld [vmem:[#allocation13 + $0x188] sm:$0xff]
    %v713 = vld [vmem:[#allocation13 + $0x190] sm:$0xff]
    %v714 = vld [vmem:[#allocation13 + $0x198] sm:$0xff]
    %v715 = vld [vmem:[#allocation13 + $0x1a0] sm:$0xff]
    %v716 = vld [vmem:[#allocation13 + $0x1a8] sm:$0xff]
    %v717 = vld [vmem:[#allocation13 + $0x1b0] sm:$0xff]
    %v718 = vld [vmem:[#allocation13 + $0x1b8] sm:$0xff]
    %v719 = vld [vmem:[#allocation13 + $0x1c0] sm:$0xff]
    %v720 = vld [vmem:[#allocation13 + $0x1c8] sm:$0xff]
    %v721 = vld [vmem:[#allocation13 + $0x1d0] sm:$0xff]
    %v722 = vld [vmem:[#allocation13 + $0x1d8] sm:$0xff]
    %v723 = vld [vmem:[#allocation13 + $0x1e0] sm:$0xff]
    %v724 = vld [vmem:[#allocation13 + $0x1e8] sm:$0xff]
    %v725 = vld [vmem:[#allocation13 + $0x1f0] sm:$0xff]
    %v726 = vld [vmem:[#allocation13 + $0x1f8] sm:$0xff]
    %727 = vmatprep.subr.mxu0 %v664
    %728 = vmatpush1.msra.mxu0 %v663
    %729 = vmatprep.subr.mxu0 %v668
    %730 = vmatpush1.msra.mxu0 %v667
    %731 = vmatprep.subr.mxu0 %v672
    %732 = vmatpush1.msra.mxu0 %v671
    %733 = vmatprep.subr.mxu0 %v676
    %734 = vmatpush1.msra.mxu0 %v675
    %735 = vmatprep.subr.mxu0 %v680
    %736 = vmatpush1.msra.mxu0 %v679
    %737 = vmatprep.subr.mxu0 %v684
    %738 = vmatpush1.msra.mxu0 %v683
    %739 = vmatprep.subr.mxu0 %v688
    %740 = vmatpush1.msra.mxu0 %v687
    %741 = vmatprep.subr.mxu0 %v692
    %742 = vmatpush1.msra.mxu0 %v691
    %743 = vmatprep.subr.mxu0 %v696
    %744 = vmatpush1.msra.mxu0 %v695
    %745 = vmatprep.subr.mxu0 %v700
    %746 = vmatpush1.msra.mxu0 %v699
    %747 = vmatprep.subr.mxu0 %v704
    %748 = vmatpush1.msra.mxu0 %v703
    %749 = vmatprep.subr.mxu0 %v708
    %750 = vmatpush1.msra.mxu0 %v707
    %751 = vmatprep.subr.mxu0 %v712
    %752 = vmatpush1.msra.mxu0 %v711
    %753 = vmatprep.subr.mxu0 %v716
    %754 = vmatpush1.msra.mxu0 %v715
    %755 = vmatprep.subr.mxu0 %v720
    %756 = vmatpush1.msra.mxu0 %v719
    %757 = vmatprep.subr.mxu0 %v724
    %758 = vmatpush1.msra.mxu0 %v723
    %759 = vmatprep.subr.mxu0 0.0
    %760 = vmatpush1.msra.mxu0 0.0
    %761 = vmatprep.subr.mxu0 0.0
    %762 = vmatpush1.msra.mxu0 0.0
    %763 = vmatprep.subr.mxu0 0.0
    %764 = vmatpush1.msra.mxu0 0.0
    %765 = vmatprep.subr.mxu0 0.0
    %766 = vmatpush1.msra.mxu0 0.0
    %767 = vmatprep.subr.mxu0 0.0
    %768 = vmatpush1.msra.mxu0 0.0
    %769 = vmatprep.subr.mxu0 0.0
    %770 = vmatpush1.msra.mxu0 0.0
    %771 = vmatprep.subr.mxu0 0.0
    %772 = vmatpush1.msra.mxu0 0.0
    %773 = vmatprep.subr.mxu0 0.0
    %774 = vmatpush1.msra.mxu0 0.0
    %775 = vmatprep.subr.mxu0 0.0
    %776 = vmatpush1.msra.mxu0 0.0
    %777 = vmatprep.subr.mxu0 0.0
    %778 = vmatpush1.msra.mxu0 0.0
    %779 = vmatprep.subr.mxu0 0.0
    %780 = vmatpush1.msra.mxu0 0.0
    %781 = vmatprep.subr.mxu0 0.0
    %782 = vmatpush1.msra.mxu0 0.0
    %783 = vmatprep.subr.mxu0 0.0
    %784 = vmatpush1.msra.mxu0 0.0
    %785 = vmatprep.subr.mxu0 0.0
    %786 = vmatpush1.msra.mxu0 0.0
    %787 = vmatprep.subr.mxu0 0.0
    %788 = vmatpush1.msra.mxu0 0.0
    %789 = vmatprep.subr.mxu0 0.0
    %790 = vmatpush1.msra.mxu0 0.0
    %791 = vmatprep.mubr.f32.mxu0 0.0
    %792 = vmatmul.mubr.f32.gmra.mrb[0].mxu0 %v594
    %v793 = vpop.f32.mrb[0].mxu0
    %v794 = vadd.f32 0.0, %v793
    %v795 = vpop.f32.mrb[0].mxu0
    %v796 = vadd.f32 0.0, %v795
    %797 = vdwg.mxu0
    %798 = vmatprep.subr.mxu0 %v666
    %799 = vmatpush1.msra.mxu0 %v665
    %800 = vmatprep.subr.mxu0 %v670
    %801 = vmatpush1.msra.mxu0 %v669
    %802 = vmatprep.subr.mxu0 %v674
    %803 = vmatpush1.msra.mxu0 %v673
    %804 = vmatprep.subr.mxu0 %v678
    %805 = vmatpush1.msra.mxu0 %v677
    %806 = vmatprep.subr.mxu0 %v682
    %807 = vmatpush1.msra.mxu0 %v681
    %808 = vmatprep.subr.mxu0 %v686
    %809 = vmatpush1.msra.mxu0 %v685
    %810 = vmatprep.subr.mxu0 %v690
    %811 = vmatpush1.msra.mxu0 %v689
    %812 = vmatprep.subr.mxu0 %v694
    %813 = vmatpush1.msra.mxu0 %v693
    %814 = vmatprep.subr.mxu0 %v698
    %815 = vmatpush1.msra.mxu0 %v697
    %816 = vmatprep.subr.mxu0 %v702
    %817 = vmatpush1.msra.mxu0 %v701
    %818 = vmatprep.subr.mxu0 %v706
    %819 = vmatpush1.msra.mxu0 %v705
    %820 = vmatprep.subr.mxu0 %v710
    %821 = vmatpush1.msra.mxu0 %v709
    %822 = vmatprep.subr.mxu0 %v714
    %823 = vmatpush1.msra.mxu0 %v713
    %824 = vmatprep.subr.mxu0 %v718
    %825 = vmatpush1.msra.mxu0 %v717
    %826 = vmatprep.subr.mxu0 %v722
    %827 = vmatpush1.msra.mxu0 %v721
    %828 = vmatprep.subr.mxu0 %v726
    %829 = vmatpush1.msra.mxu0 %v725
    %830 = vmatprep.subr.mxu0 0.0
    %831 = vmatpush1.msra.mxu0 0.0
    %832 = vmatprep.subr.mxu0 0.0
    %833 = vmatpush1.msra.mxu0 0.0
    %834 = vmatprep.subr.mxu0 0.0
    %835 = vmatpush1.msra.mxu0 0.0
    %836 = vmatprep.subr.mxu0 0.0
    %837 = vmatpush1.msra.mxu0 0.0
    %838 = vmatprep.subr.mxu0 0.0
    %839 = vmatpush1.msra.mxu0 0.0
    %840 = vmatprep.subr.mxu0 0.0
    %841 = vmatpush1.msra.mxu0 0.0
    %842 = vmatprep.subr.mxu0 0.0
    %843 = vmatpush1.msra.mxu0 0.0
    %844 = vmatprep.subr.mxu0 0.0
    %845 = vmatpush1.msra.mxu0 0.0
    %846 = vmatprep.subr.mxu0 0.0
    %847 = vmatpush1.msra.mxu0 0.0
    %848 = vmatprep.subr.mxu0 0.0
    %849 = vmatpush1.msra.mxu0 0.0
    %850 = vmatprep.subr.mxu0 0.0
    %851 = vmatpush1.msra.mxu0 0.0
    %852 = vmatprep.subr.mxu0 0.0
    %853 = vmatpush1.msra.mxu0 0.0
    %854 = vmatprep.subr.mxu0 0.0
    %855 = vmatpush1.msra.mxu0 0.0
    %856 = vmatprep.subr.mxu0 0.0
    %857 = vmatpush1.msra.mxu0 0.0
    %858 = vmatprep.subr.mxu0 0.0
    %859 = vmatpush1.msra.mxu0 0.0
    %860 = vmatprep.subr.mxu0 0.0
    %861 = vmatpush1.msra.mxu0 0.0
    %862 = vmatprep.mubr.f32.mxu0 0.0
    %863 = vmatmul.mubr.f32.gmra.mrb[0].mxu0 %v594
    %v864 = vpop.f32.mrb[0].mxu0
    %v865 = vadd.f32 0.0, %v864
    %v866 = vpop.f32.mrb[0].mxu0
    %v867 = vadd.f32 0.0, %v866
    %868 = vdwg.mxu0
    %869 = vmatprep.subr.mxu0 %v600
    %870 = vmatpush1.msra.mxu0 %v599
    %871 = vmatprep.subr.mxu0 %v604
    %872 = vmatpush1.msra.mxu0 %v603
    %873 = vmatprep.subr.mxu0 %v608
    %874 = vmatpush1.msra.mxu0 %v607
    %875 = vmatprep.subr.mxu0 %v612
    %876 = vmatpush1.msra.mxu0 %v611
    %877 = vmatprep.subr.mxu0 %v616
    %878 = vmatpush1.msra.mxu0 %v615
    %879 = vmatprep.subr.mxu0 %v620
    %880 = vmatpush1.msra.mxu0 %v619
    %881 = vmatprep.subr.mxu0 %v624
    %882 = vmatpush1.msra.mxu0 %v623
    %883 = vmatprep.subr.mxu0 %v628
    %884 = vmatpush1.msra.mxu0 %v627
    %885 = vmatprep.subr.mxu0 %v632
    %886 = vmatpush1.msra.mxu0 %v631
    %887 = vmatprep.subr.mxu0 %v636
    %888 = vmatpush1.msra.mxu0 %v635
    %889 = vmatprep.subr.mxu0 %v640
    %890 = vmatpush1.msra.mxu0 %v639
    %891 = vmatprep.subr.mxu0 %v644
    %892 = vmatpush1.msra.mxu0 %v643
    %893 = vmatprep.subr.mxu0 %v648
    %894 = vmatpush1.msra.mxu0 %v647
    %895 = vmatprep.subr.mxu0 %v652
    %896 = vmatpush1.msra.mxu0 %v651
    %897 = vmatprep.subr.mxu0 %v656
    %898 = vmatpush1.msra.mxu0 %v655
    %899 = vmatprep.subr.mxu0 %v660
    %900 = vmatpush1.msra.mxu0 %v659
    %901 = vmatprep.subr.mxu0 0.0
    %902 = vmatpush1.msra.mxu0 0.0
    %903 = vmatprep.subr.mxu0 0.0
    %904 = vmatpush1.msra.mxu0 0.0
    %905 = vmatprep.subr.mxu0 0.0
    %906 = vmatpush1.msra.mxu0 0.0
    %907 = vmatprep.subr.mxu0 0.0
    %908 = vmatpush1.msra.mxu0 0.0
    %909 = vmatprep.subr.mxu0 0.0
    %910 = vmatpush1.msra.mxu0 0.0
    %911 = vmatprep.subr.mxu0 0.0
    %912 = vmatpush1.msra.mxu0 0.0
    %913 = vmatprep.subr.mxu0 0.0
    %914 = vmatpush1.msra.mxu0 0.0
    %915 = vmatprep.subr.mxu0 0.0
    %916 = vmatpush1.msra.mxu0 0.0
    %917 = vmatprep.subr.mxu0 0.0
    %918 = vmatpush1.msra.mxu0 0.0
    %919 = vmatprep.subr.mxu0 0.0
    %920 = vmatpush1.msra.mxu0 0.0
    %921 = vmatprep.subr.mxu0 0.0
    %922 = vmatpush1.msra.mxu0 0.0
    %923 = vmatprep.subr.mxu0 0.0
    %924 = vmatpush1.msra.mxu0 0.0
    %925 = vmatprep.subr.mxu0 0.0
    %926 = vmatpush1.msra.mxu0 0.0
    %927 = vmatprep.subr.mxu0 0.0
    %928 = vmatpush1.msra.mxu0 0.0
    %929 = vmatprep.subr.mxu0 0.0
    %930 = vmatpush1.msra.mxu0 0.0
    %931 = vmatprep.subr.mxu0 0.0
    %932 = vmatpush1.msra.mxu0 0.0
    %933 = vmatprep.mubr.f32.mxu0 0.0
    %934 = vmatmul.mubr.f32.gmra.mrb[0].mxu0 %v598
    %v935 = vpop.f32.mrb[0].mxu0
    %v936 = vadd.f32 %v794, %v935
    %v937 = vpop.f32.mrb[0].mxu0
    %v938 = vadd.f32 %v796, %v937
    %939 = vdwg.mxu0
    %940 = vmatprep.subr.mxu0 %v602
    %941 = vmatpush1.msra.mxu0 %v601
    %942 = vmatprep.subr.mxu0 %v606
    %943 = vmatpush1.msra.mxu0 %v605
    %944 = vmatprep.subr.mxu0 %v610
    %945 = vmatpush1.msra.mxu0 %v609
    %946 = vmatprep.subr.mxu0 %v614
    %947 = vmatpush1.msra.mxu0 %v613
    %948 = vmatprep.subr.mxu0 %v618
    %949 = vmatpush1.msra.mxu0 %v617
    %950 = vmatprep.subr.mxu0 %v622
    %951 = vmatpush1.msra.mxu0 %v621
    %952 = vmatprep.subr.mxu0 %v626
    %953 = vmatpush1.msra.mxu0 %v625
    %954 = vmatprep.subr.mxu0 %v630
    %955 = vmatpush1.msra.mxu0 %v629
    %956 = vmatprep.subr.mxu0 %v634
    %957 = vmatpush1.msra.mxu0 %v633
    %958 = vmatprep.subr.mxu0 %v638
    %959 = vmatpush1.msra.mxu0 %v637
    %960 = vmatprep.subr.mxu0 %v642
    %961 = vmatpush1.msra.mxu0 %v641
    %962 = vmatprep.subr.mxu0 %v646
    %963 = vmatpush1.msra.mxu0 %v645
    %964 = vmatprep.subr.mxu0 %v650
    %965 = vmatpush1.msra.mxu0 %v649
    %966 = vmatprep.subr.mxu0 %v654
    %967 = vmatpush1.msra.mxu0 %v653
    %968 = vmatprep.subr.mxu0 %v658
    %969 = vmatpush1.msra.mxu0 %v657
    %970 = vmatprep.subr.mxu0 %v662
    %971 = vmatpush1.msra.mxu0 %v661
    %972 = vmatprep.subr.mxu0 0.0
    %973 = vmatpush1.msra.mxu0 0.0
    %974 = vmatprep.subr.mxu0 0.0
    %975 = vmatpush1.msra.mxu0 0.0
    %976 = vmatprep.subr.mxu0 0.0
    %977 = vmatpush1.msra.mxu0 0.0
    %978 = vmatprep.subr.mxu0 0.0
    %979 = vmatpush1.msra.mxu0 0.0
    %980 = vmatprep.subr.mxu0 0.0
    %981 = vmatpush1.msra.mxu0 0.0
    %982 = vmatprep.subr.mxu0 0.0
    %983 = vmatpush1.msra.mxu0 0.0
    %984 = vmatprep.subr.mxu0 0.0
    %985 = vmatpush1.msra.mxu0 0.0
    %986 = vmatprep.subr.mxu0 0.0
    %987 = vmatpush1.msra.mxu0 0.0
    %988 = vmatprep.subr.mxu0 0.0
    %989 = vmatpush1.msra.mxu0 0.0
    %990 = vmatprep.subr.mxu0 0.0
    %991 = vmatpush1.msra.mxu0 0.0
    %992 = vmatprep.subr.mxu0 0.0
    %993 = vmatpush1.msra.mxu0 0.0
    %994 = vmatprep.subr.mxu0 0.0
    %995 = vmatpush1.msra.mxu0 0.0
    %996 = vmatprep.subr.mxu0 0.0
    %997 = vmatpush1.msra.mxu0 0.0
    %998 = vmatprep.subr.mxu0 0.0
    %999 = vmatpush1.msra.mxu0 0.0
    %1000 = vmatprep.subr.mxu0 0.0
    %1001 = vmatpush1.msra.mxu0 0.0
    %1002 = vmatprep.subr.mxu0 0.0
    %1003 = vmatpush1.msra.mxu0 0.0
    %1004 = vmatprep.mubr.f32.mxu0 0.0
    %1005 = vmatmul.mubr.f32.gmra.mrb[0].mxu0 %v598
    %v1006 = vpop.f32.mrb[0].mxu0
    %v1007 = vadd.f32 %v865, %v1006
    %v1008 = vpop.f32.mrb[0].mxu0
    %v1009 = vadd.f32 %v867, %v1008
    %1010 = vdwg.mxu0
    %v1011 = vxor.u32 %v936, 2147483648
    %v1012 = vxor.u32 %v938, 2147483648
    %v1013 = vxor.u32 %v1007, 2147483648
    %v1014 = vmul.f32 %v1011, 1.442695
    %v1015 = vpow.pop %v1014
    %v1016 = vmul.f32 %v1012, 1.442695
    %v1017 = vpow.pop %v1016
    %v1018 = vmul.f32 %v1013, 1.442695
    %v1019 = vpow.pop %v1018
    %v1020 = vadd.f32 %v1015, 1.0
    %v1021 = vadd.f32 %v1017, 1.0
    %v1022 = vadd.f32 %v1019, 1.0
    %v1023 = vrcp.pop %v1020
    %v1024 = vmul.f32 1.0, %v1023
    %v1025 = vrcp.pop %v1021
    %v1026 = vmul.f32 1.0, %v1025
    %v1027 = vrcp.pop %v1022
    %v1028 = vmul.f32 1.0, %v1027
    %v1029 = vtanh.pop %v1009
    %v1030 = vmul.f32 %v1026, %v592
    %v1031 = vmul.f32 %v1024, %v1029
    %v1032 = vadd.f32 %v1030, %v1031
    %v1033 = vtanh.pop %v1032
    %v1034 = vmul.f32 %v1028, %v1033
    %v1035 = vmax.f32 %v1034, 0.0
    %s1036 = scalar_lea.vmem [#allocation2], 8
    %1037 = vst [vmem:[%s1036] sm:$0xff] %v1035
    %1038 = vst [vmem:[#allocation3] sm:$0xff] %v1034
    %1039 = vst [vmem:[#allocation4] sm:$0xff] %v1032
    %1040 = vst [vmem:[#allocation20] sm:$0xff] %v1034
    %1041 = vst [vmem:[#allocation22] sm:$0xff] %v1032
    %v1042 = vld [vmem:[#allocation2] sm:$0xff]
    %v1043 = vld [vmem:[#allocation2 + $0x8] sm:$0xff]
    %v1044 = vld [vmem:[#allocation14] sm:$0xff]
    %v1045 = vld [vmem:[#allocation14 + $0x8] sm:$0xff]
    %v1046 = vld [vmem:[#allocation14 + $0x10] sm:$0xff]
    %v1047 = vld [vmem:[#allocation14 + $0x18] sm:$0xff]
    %v1048 = vld [vmem:[#allocation14 + $0x20] sm:$0xff]
    %v1049 = vld [vmem:[#allocation14 + $0x28] sm:$0xff]
    %v1050 = vld [vmem:[#allocation14 + $0x30] sm:$0xff]
    %v1051 = vld [vmem:[#allocation14 + $0x38] sm:$0xff]
    %v1052 = vld [vmem:[#allocation14 + $0x40] sm:$0xff]
    %v1053 = vld [vmem:[#allocation14 + $0x48] sm:$0xff]
    %v1054 = vld [vmem:[#allocation14 + $0x50] sm:$0xff]
    %v1055 = vld [vmem:[#allocation14 + $0x58] sm:$0xff]
    %v1056 = vld [vmem:[#allocation14 + $0x60] sm:$0xff]
    %v1057 = vld [vmem:[#allocation14 + $0x68] sm:$0xff]
    %v1058 = vld [vmem:[#allocation14 + $0x70] sm:$0xff]
    %v1059 = vld [vmem:[#allocation14 + $0x78] sm:$0xff]
    %v1060 = vld [vmem:[%s6] sm:$0x1]
    %v1062 = vlaneseq
    %v1063 = vshrl.u32 %v1062, 7
    %v1064 = vsub.s32 0, %v1063
    %v1065 = vrot.slane %v1060, %v1064
    %1067 = vmatprep.subr.mxu0 0.0
    %1068 = vmatpush1.msra.mxu0 %v1044
    %1069 = vmatprep.subr.mxu0 0.0
    %1070 = vmatpush1.msra.mxu0 %v1045
    %1071 = vmatprep.subr.mxu0 0.0
    %1072 = vmatpush1.msra.mxu0 %v1046
    %1073 = vmatprep.subr.mxu0 0.0
    %1074 = vmatpush1.msra.mxu0 %v1047
    %1075 = vmatprep.subr.mxu0 0.0
    %1076 = vmatpush1.msra.mxu0 %v1048
    %1077 = vmatprep.subr.mxu0 0.0
    %1078 = vmatpush1.msra.mxu0 %v1049
    %1079 = vmatprep.subr.mxu0 0.0
    %1080 = vmatpush1.msra.mxu0 %v1050
    %1081 = vmatprep.subr.mxu0 0.0
    %1082 = vmatpush1.msra.mxu0 %v1051
    %1083 = vmatprep.subr.mxu0 0.0
    %1084 = vmatpush1.msra.mxu0 %v1052
    %1085 = vmatprep.subr.mxu0 0.0
    %1086 = vmatpush1.msra.mxu0 %v1053
    %1087 = vmatprep.subr.mxu0 0.0
    %1088 = vmatpush1.msra.mxu0 %v1054
    %1089 = vmatprep.subr.mxu0 0.0
    %1090 = vmatpush1.msra.mxu0 %v1055
    %1091 = vmatprep.subr.mxu0 0.0
    %1092 = vmatpush1.msra.mxu0 %v1056
    %1093 = vmatprep.subr.mxu0 0.0
    %1094 = vmatpush1.msra.mxu0 %v1057
    %1095 = vmatprep.subr.mxu0 0.0
    %1096 = vmatpush1.msra.mxu0 %v1058
    %1097 = vmatprep.subr.mxu0 0.0
    %1098 = vmatpush1.msra.mxu0 %v1059
    %1099 = vmatprep.subr.mxu0 0.0
    %1100 = vmatpush1.msra.mxu0 0.0
    %1101 = vmatprep.subr.mxu0 0.0
    %1102 = vmatpush1.msra.mxu0 0.0
    %1103 = vmatprep.subr.mxu0 0.0
    %1104 = vmatpush1.msra.mxu0 0.0
    %1105 = vmatprep.subr.mxu0 0.0
    %1106 = vmatpush1.msra.mxu0 0.0
    %1107 = vmatprep.subr.mxu0 0.0
    %1108 = vmatpush1.msra.mxu0 0.0
    %1109 = vmatprep.subr.mxu0 0.0
    %1110 = vmatpush1.msra.mxu0 0.0
    %1111 = vmatprep.subr.mxu0 0.0
    %1112 = vmatpush1.msra.mxu0 0.0
    %1113 = vmatprep.subr.mxu0 0.0
    %1114 = vmatpush1.msra.mxu0 0.0
    %1115 = vmatprep.subr.mxu0 0.0
    %1116 = vmatpush1.msra.mxu0 0.0
    %1117 = vmatprep.subr.mxu0 0.0
    %1118 = vmatpush1.msra.mxu0 0.0
    %1119 = vmatprep.subr.mxu0 0.0
    %1120 = vmatpush1.msra.mxu0 0.0
    %1121 = vmatprep.subr.mxu0 0.0
    %1122 = vmatpush1.msra.mxu0 0.0
    %1123 = vmatprep.subr.mxu0 0.0
    %1124 = vmatpush1.msra.mxu0 0.0
    %1125 = vmatprep.subr.mxu0 0.0
    %1126 = vmatpush1.msra.mxu0 0.0
    %1127 = vmatprep.subr.mxu0 0.0
    %1128 = vmatpush1.msra.mxu0 0.0
    %1129 = vmatprep.subr.mxu0 0.0
    %1130 = vmatpush1.msra.mxu0 0.0
    %1131 = vmatprep.mubr.f32.mxu0 0.0
    %1132 = vmatmul.mubr.f32.gmra.mrb[0].mxu0 %v1042
    %v1133 = vpop.f32.mrb[0].mxu0
    %v1134 = vadd.f32 %v1065, %v1133
    %v1135 = vpop.f32.mrb[0].mxu0
    %1136 = vmatprep.mubr.f32.mxu0 0.0
    %1137 = vmatmul.mubr.f32.gmra.mrb[0].mxu0 %v1043
    %v1138 = vpop.f32.mrb[0].mxu0
    %v1139 = vadd.f32 %v1065, %v1138
    %v1140 = vpop.f32.mrb[0].mxu0
    %1141 = vdwg.mxu0
    %v1142 = vmax.f32 %v1134, 0.0
    %v1143 = vmax.f32 %v1139, 0.0
    %v1144 = vld [vmem:[#allocation16] sm:$0xff]
    %v1145 = vld [vmem:[#allocation16 + $0x8] sm:$0xff]
    %v1146 = vld [vmem:[#allocation16 + $0x10] sm:$0xff]
    %v1147 = vld [vmem:[#allocation16 + $0x18] sm:$0xff]
    %v1148 = vld [vmem:[#allocation16 + $0x20] sm:$0xff]
    %v1149 = vld [vmem:[#allocation16 + $0x28] sm:$0xff]
    %v1150 = vld [vmem:[#allocation16 + $0x30] sm:$0xff]
    %v1151 = vld [vmem:[#allocation16 + $0x38] sm:$0xff]
    %v1152 = vld [vmem:[#allocation16 + $0x40] sm:$0xff]
    %v1153 = vld [vmem:[#allocation16 + $0x48] sm:$0xff]
    %v1154 = vld [vmem:[#allocation16 + $0x50] sm:$0xff]
    %v1155 = vld [vmem:[#allocation16 + $0x58] sm:$0xff]
    %v1156 = vld [vmem:[#allocation16 + $0x60] sm:$0xff]
    %v1157 = vld [vmem:[#allocation16 + $0x68] sm:$0xff]
    %v1158 = vld [vmem:[#allocation16 + $0x70] sm:$0xff]
    %v1159 = vld [vmem:[#allocation16 + $0x78] sm:$0xff]
    %v1160 = vld [vmem:[%s8] sm:$0x1]
    %v1162 = vlaneseq
    %v1163 = vshrl.u32 %v1162, 7
    %v1164 = vsub.s32 0, %v1163
    %v1165 = vrot.slane %v1160, %v1164
    %1167 = vmatprep.subr.mxu0 0.0
    %1168 = vmatpush1.msra.mxu0 %v1144
    %1169 = vmatprep.subr.mxu0 0.0
    %1170 = vmatpush1.msra.mxu0 %v1145
    %1171 = vmatprep.subr.mxu0 0.0
    %1172 = vmatpush1.msra.mxu0 %v1146
    %1173 = vmatprep.subr.mxu0 0.0
    %1174 = vmatpush1.msra.mxu0 %v1147
    %1175 = vmatprep.subr.mxu0 0.0
    %1176 = vmatpush1.msra.mxu0 %v1148
    %1177 = vmatprep.subr.mxu0 0.0
    %1178 = vmatpush1.msra.mxu0 %v1149
    %1179 = vmatprep.subr.mxu0 0.0
    %1180 = vmatpush1.msra.mxu0 %v1150
    %1181 = vmatprep.subr.mxu0 0.0
    %1182 = vmatpush1.msra.mxu0 %v1151
    %1183 = vmatprep.subr.mxu0 0.0
    %1184 = vmatpush1.msra.mxu0 %v1152
    %1185 = vmatprep.subr.mxu0 0.0
    %1186 = vmatpush1.msra.mxu0 %v1153
    %1187 = vmatprep.subr.mxu0 0.0
    %1188 = vmatpush1.msra.mxu0 %v1154
    %1189 = vmatprep.subr.mxu0 0.0
    %1190 = vmatpush1.msra.mxu0 %v1155
    %1191 = vmatprep.subr.mxu0 0.0
    %1192 = vmatpush1.msra.mxu0 %v1156
    %1193 = vmatprep.subr.mxu0 0.0
    %1194 = vmatpush1.msra.mxu0 %v1157
    %1195 = vmatprep.subr.mxu0 0.0
    %1196 = vmatpush1.msra.mxu0 %v1158
    %1197 = vmatprep.subr.mxu0 0.0
    %1198 = vmatpush1.msra.mxu0 %v1159
    %1199 = vmatprep.subr.mxu0 0.0
    %1200 = vmatpush1.msra.mxu0 0.0
    %1201 = vmatprep.subr.mxu0 0.0
    %1202 = vmatpush1.msra.mxu0 0.0
    %1203 = vmatprep.subr.mxu0 0.0
    %1204 = vmatpush1.msra.mxu0 0.0
    %1205 = vmatprep.subr.mxu0 0.0
    %1206 = vmatpush1.msra.mxu0 0.0
    %1207 = vmatprep.subr.mxu0 0.0
    %1208 = vmatpush1.msra.mxu0 0.0
    %1209 = vmatprep.subr.mxu0 0.0
    %1210 = vmatpush1.msra.mxu0 0.0
    %1211 = vmatprep.subr.mxu0 0.0
    %1212 = vmatpush1.msra.mxu0 0.0
    %1213 = vmatprep.subr.mxu0 0.0
    %1214 = vmatpush1.msra.mxu0 0.0
    %1215 = vmatprep.subr.mxu0 0.0
    %1216 = vmatpush1.msra.mxu0 0.0
    %1217 = vmatprep.subr.mxu0 0.0
    %1218 = vmatpush1.msra.mxu0 0.0
    %1219 = vmatprep.subr.mxu0 0.0
    %1220 = vmatpush1.msra.mxu0 0.0
    %1221 = vmatprep.subr.mxu0 0.0
    %1222 = vmatpush1.msra.mxu0 0.0
    %1223 = vmatprep.subr.mxu0 0.0
    %1224 = vmatpush1.msra.mxu0 0.0
    %1225 = vmatprep.subr.mxu0 0.0
    %1226 = vmatpush1.msra.mxu0 0.0
    %1227 = vmatprep.subr.mxu0 0.0
    %1228 = vmatpush1.msra.mxu0 0.0
    %1229 = vmatprep.subr.mxu0 0.0
    %1230 = vmatpush1.msra.mxu0 0.0
    %1231 = vmatprep.mubr.f32.mxu0 0.0
    %1232 = vmatmul.mubr.f32.gmra.mrb[0].mxu0 %v1142
    %v1233 = vpop.f32.mrb[0].mxu0
    %v1234 = vadd.f32 %v1165, %v1233
    %v1235 = vpop.f32.mrb[0].mxu0
    %1236 = vmatprep.mubr.f32.mxu0 0.0
    %1237 = vmatmul.mubr.f32.gmra.mrb[0].mxu0 %v1143
    %v1238 = vpop.f32.mrb[0].mxu0
    %v1239 = vadd.f32 %v1165, %v1238
    %v1240 = vpop.f32.mrb[0].mxu0
    %1241 = vdwg.mxu0
    %v1242 = vmax.f32 %v1234, 0.0
    %v1243 = vmax.f32 %v1239, 0.0
    %v1244 = vld [vmem:[#allocation17] sm:$0xff]
    %v1245 = vld [vmem:[#allocation17 + $0x8] sm:$0xff]
    %v1246 = vld [vmem:[#allocation17 + $0x10] sm:$0xff]
    %v1247 = vld [vmem:[#allocation17 + $0x18] sm:$0xff]
    %v1248 = vld [vmem:[#allocation17 + $0x20] sm:$0xff]
    %v1249 = vld [vmem:[#allocation17 + $0x28] sm:$0xff]
    %v1250 = vld [vmem:[#allocation17 + $0x30] sm:$0xff]
    %v1251 = vld [vmem:[#allocation17 + $0x38] sm:$0xff]
    %v1252 = vld [vmem:[#allocation17 + $0x40] sm:$0xff]
    %v1253 = vld [vmem:[#allocation17 + $0x48] sm:$0xff]
    %v1254 = vld [vmem:[#allocation17 + $0x50] sm:$0xff]
    %v1255 = vld [vmem:[#allocation17 + $0x58] sm:$0xff]
    %v1256 = vld [vmem:[#allocation17 + $0x60] sm:$0xff]
    %v1257 = vld [vmem:[#allocation17 + $0x68] sm:$0xff]
    %v1258 = vld [vmem:[#allocation17 + $0x70] sm:$0xff]
    %v1259 = vld [vmem:[#allocation17 + $0x78] sm:$0xff]
    %v1260 = vld [vmem:[%s10] sm:$0x1]
    %v1262 = vlaneseq
    %v1263 = vshrl.u32 %v1262, 7
    %v1264 = vsub.s32 0, %v1263
    %v1265 = vrot.slane %v1260, %v1264
    %1267 = vmatprep.subr.mxu0 0.0
    %1268 = vmatpush1.msra.mxu0 %v1244
    %1269 = vmatprep.subr.mxu0 0.0
    %1270 = vmatpush1.msra.mxu0 %v1245
    %1271 = vmatprep.subr.mxu0 0.0
    %1272 = vmatpush1.msra.mxu0 %v1246
    %1273 = vmatprep.subr.mxu0 0.0
    %1274 = vmatpush1.msra.mxu0 %v1247
    %1275 = vmatprep.subr.mxu0 0.0
    %1276 = vmatpush1.msra.mxu0 %v1248
    %1277 = vmatprep.subr.mxu0 0.0
    %1278 = vmatpush1.msra.mxu0 %v1249
    %1279 = vmatprep.subr.mxu0 0.0
    %1280 = vmatpush1.msra.mxu0 %v1250
    %1281 = vmatprep.subr.mxu0 0.0
    %1282 = vmatpush1.msra.mxu0 %v1251
    %1283 = vmatprep.subr.mxu0 0.0
    %1284 = vmatpush1.msra.mxu0 %v1252
    %1285 = vmatprep.subr.mxu0 0.0
    %1286 = vmatpush1.msra.mxu0 %v1253
    %1287 = vmatprep.subr.mxu0 0.0
    %1288 = vmatpush1.msra.mxu0 %v1254
    %1289 = vmatprep.subr.mxu0 0.0
    %1290 = vmatpush1.msra.mxu0 %v1255
    %1291 = vmatprep.subr.mxu0 0.0
    %1292 = vmatpush1.msra.mxu0 %v1256
    %1293 = vmatprep.subr.mxu0 0.0
    %1294 = vmatpush1.msra.mxu0 %v1257
    %1295 = vmatprep.subr.mxu0 0.0
    %1296 = vmatpush1.msra.mxu0 %v1258
    %1297 = vmatprep.subr.mxu0 0.0
    %1298 = vmatpush1.msra.mxu0 %v1259
    %1299 = vmatprep.subr.mxu0 0.0
    %1300 = vmatpush1.msra.mxu0 0.0
    %1301 = vmatprep.subr.mxu0 0.0
    %1302 = vmatpush1.msra.mxu0 0.0
    %1303 = vmatprep.subr.mxu0 0.0
    %1304 = vmatpush1.msra.mxu0 0.0
    %1305 = vmatprep.subr.mxu0 0.0
    %1306 = vmatpush1.msra.mxu0 0.0
    %1307 = vmatprep.subr.mxu0 0.0
    %1308 = vmatpush1.msra.mxu0 0.0
    %1309 = vmatprep.subr.mxu0 0.0
    %1310 = vmatpush1.msra.mxu0 0.0
    %1311 = vmatprep.subr.mxu0 0.0
    %1312 = vmatpush1.msra.mxu0 0.0
    %1313 = vmatprep.subr.mxu0 0.0
    %1314 = vmatpush1.msra.mxu0 0.0
    %1315 = vmatprep.subr.mxu0 0.0
    %1316 = vmatpush1.msra.mxu0 0.0
    %1317 = vmatprep.subr.mxu0 0.0
    %1318 = vmatpush1.msra.mxu0 0.0
    %1319 = vmatprep.subr.mxu0 0.0
    %1320 = vmatpush1.msra.mxu0 0.0
    %1321 = vmatprep.subr.mxu0 0.0
    %1322 = vmatpush1.msra.mxu0 0.0
    %1323 = vmatprep.subr.mxu0 0.0
    %1324 = vmatpush1.msra.mxu0 0.0
    %1325 = vmatprep.subr.mxu0 0.0
    %1326 = vmatpush1.msra.mxu0 0.0
    %1327 = vmatprep.subr.mxu0 0.0
    %1328 = vmatpush1.msra.mxu0 0.0
    %1329 = vmatprep.subr.mxu0 0.0
    %1330 = vmatpush1.msra.mxu0 0.0
    %1331 = vmatprep.mubr.f32.mxu0 0.0
    %1332 = vmatmul.mubr.f32.gmra.mrb[0].mxu0 %v1242
    %v1333 = vpop.f32.mrb[0].mxu0
    %v1334 = vadd.f32 %v1265, %v1333
    %v1335 = vpop.f32.mrb[0].mxu0
    %1336 = vmatprep.mubr.f32.mxu0 0.0
    %1337 = vmatmul.mubr.f32.gmra.mrb[0].mxu0 %v1243
    %v1338 = vpop.f32.mrb[0].mxu0
    %v1339 = vadd.f32 %v1265, %v1338
    %v1340 = vpop.f32.mrb[0].mxu0
    %1341 = vdwg.mxu0
    %1342 = vst [vmem:[#allocation19] sm:$0xff] %v1334
    %1343 = vst [vmem:[#allocation19 + $0x8] sm:$0xff] %v1339
    // Predicated region
    $region82: #{tpu_custom_call.1} parent=1 // pred_check
      _
    $region83: #{tpu_custom_call.1} parent=1 // pred_check_branch
      %1345 = sbr.rel (0) target = $region85
    $region84: #{tpu_custom_call.1} parent=1 // pred_region
      %s1347 = ssub.s32 256, 256
      %1348 = vsyncadd [#allocation7], %s1347
      %s1349 = sshll.u32 [#allocation19], 4
      %s1350 = int_to_ptr.vmem [resolvable:$true] %s1349
      %1355 = dma.vmem_to_hbm [thread:$0]  %s1350, 256, %s11, [#allocation7], 128, 128, 8
    $region85: #{tpu_custom_call.1} parent=1 // pred_fallthru
      _
    // Predicated region
    $region86: #{tpu_custom_call.1} parent=1 // pred_check
      _
    $region87: #{tpu_custom_call.1} parent=1 // pred_check_branch
      %1357 = sbr.rel (0) target = $region89
    $region88: #{tpu_custom_call.1} parent=1 // pred_region
      %s1359 = ssub.s32 128, 128
      %1360 = vsyncadd [#allocation21], %s1359
      %s1362 = sshll.u32 [#allocation20], 4
      %s1363 = int_to_ptr.vmem [resolvable:$true] %s1362
      %1365 = dma.vmem_to_hbm [thread:$0]  %s1363, 128, %s12, [#allocation21]
    $region89: #{tpu_custom_call.1} parent=1 // pred_fallthru
      _
    // Predicated region
    $region90: #{tpu_custom_call.1} parent=1 // pred_check
      _
    $region91: #{tpu_custom_call.1} parent=1 // pred_check_branch
      %1367 = sbr.rel (0) target = $region93
    $region92: #{tpu_custom_call.1} parent=1 // pred_region
      %s1369 = ssub.s32 128, 128
      %1370 = vsyncadd [#allocation21], %s1369
      %s1372 = sshll.u32 [#allocation22], 4
      %s1373 = int_to_ptr.vmem [resolvable:$true] %s1372
      %1375 = dma.vmem_to_hbm [thread:$0]  %s1373, 128, %s13, [#allocation21]
    $region93: #{tpu_custom_call.1} parent=1 // pred_fallthru
      _
    // Predicated region
    $region94: #{tpu_custom_call.1} parent=1 // pred_check
      _
    $region95: #{tpu_custom_call.1} parent=1 // pred_check_branch
      %1377 = sbr.rel (0) target = $region97
    $region96: #{tpu_custom_call.1} parent=1 // pred_region
      %1378 = dma.done [#allocation7], 256
    $region97: #{tpu_custom_call.1} parent=1 // pred_fallthru
      _
    // Predicated region
    $region98: #{tpu_custom_call.1} parent=1 // pred_check
      _
    $region99: #{tpu_custom_call.1} parent=1 // pred_check_branch
      %1380 = sbr.rel (0) target = $region101
    $region100: #{tpu_custom_call.1} parent=1 // pred_region
      %1381 = dma.done [#allocation21], 128
    $region101: #{tpu_custom_call.1} parent=1 // pred_fallthru
      _
    // Predicated region
    $region102: #{tpu_custom_call.1} parent=1 // pred_check
      _
    $region103: #{tpu_custom_call.1} parent=1 // pred_check_branch
      %1383 = sbr.rel (0) target = $region105
    $region104: #{tpu_custom_call.1} parent=1 // pred_region
      %1384 = dma.done [#allocation21], 128
    $region105: #{tpu_custom_call.1} parent=1 // pred_fallthru
      _
    %1385 = vsyncpa [#allocation6], 1
    %1386 = vsyncpa [#allocation9], 1
    %1387 = vsyncpa [#allocation12], 1
    %1388 = vsyncpa [#allocation15], 1
    %1389 = vsyncpa [#allocation18], 1
    %1390 = vsyncpa [#allocation7], 1
    %1391 = vsyncpa [#allocation21], 1

</llo_original>
